<compile_context>
chip_gen: v5e
topology: v5e:2x2
jax: 0.10.0
libtpu: 0.0.40
codegen_flags: <defaults>
</compile_context>

<pallas_src>
import math

import jax
import jax.numpy as jnp
from jax.experimental import pallas as pl
from jax.experimental.pallas import tpu as pltpu

# ----- small, module-consistent sizes -----
N = 2           # batch
T = 8           # seq len
V = 20          # source vocab size (source_size)
E = 32          # d_model
H = 4           # nhead
DH = E // H     # head dim
F = 64          # dim_feedforward
D_OUT = 16      # d_out
L = 2           # num_layers
PAD = 0         # src_pad_token
EPS = 1e-5      # layer_norm_eps
NEG = -1e9      # additive mask value for padded / cross-batch keys
NT = N * T

# packed-vector table layout (one row per small parameter vector, 128 lanes)
_ROWS_PER_LAYER = 8
_VEC_ROWS = _ROWS_PER_LAYER * L + 3          # + final_ln_g, final_ln_b, b_out
_VEC_ROWS_PAD = ((_VEC_ROWS + 7) // 8) * 8   # pad to sublane multiple


def _layer_norm(x, gamma, beta):
    # single pass: mean and mean-of-squares are independent reductions
    mu = jnp.mean(x, axis=-1, keepdims=True)
    ms = jnp.mean(x * x, axis=-1, keepdims=True)
    var = ms - mu * mu
    return (x - mu) * jax.lax.rsqrt(var + EPS) * gamma + beta


# ---------------- fused kernel ----------------

def fused_encoder_kernel(tok_ref, pemask_ref, vec_ref, emb_ref, wqkv_ref,
                         wo_ref, w1_ref, w2_ref, wout_ref, o_ref):
    # ---- embedding lookup as one-hot matmul against the VMEM-resident table
    #      (sqrt(d_model) already folded into the table) + positional encoding ----
    tok = tok_ref[...]                                            # (NT, 1) int32
    iota_v = jax.lax.broadcasted_iota(jnp.int32, (NT, V), 1)
    onehot = (tok == iota_v).astype(jnp.float32)                  # (NT, V)
    pe = pemask_ref[:, 0:E]                                       # (NT, E)
    mask = pemask_ref[:, E:E + NT]                                # (NT, NT) additive bias
    x = jnp.dot(onehot, emb_ref[...],
                preferred_element_type=jnp.float32) + pe          # (NT, E)

    scale = jnp.float32(1.0 / math.sqrt(DH))
    for l in range(L):                                            # static unroll, L=2
        r = _ROWS_PER_LAYER * l
        b_qkv = vec_ref[r + 0:r + 1, 0:3 * E]                     # (1, 3E)
        b_o   = vec_ref[r + 1:r + 2, 0:E]
        ln1g  = vec_ref[r + 2:r + 3, 0:E]
        ln1b  = vec_ref[r + 3:r + 4, 0:E]
        b1    = vec_ref[r + 4:r + 5, 0:F]
        b2    = vec_ref[r + 5:r + 6, 0:E]
        ln2g  = vec_ref[r + 6:r + 7, 0:E]
        ln2b  = vec_ref[r + 7:r + 8, 0:E]

        # ---- multi-head self-attention: one fused QKV matmul per layer ----
        qkv = jnp.dot(x, wqkv_ref[l],
                      preferred_element_type=jnp.float32) + b_qkv  # (NT, 3E)

        ctx_heads = []
        for h in range(H):                                        # static lane slices
            q = qkv[:, h * DH:(h + 1) * DH]                       # (NT, DH)
            k = qkv[:, E + h * DH:E + (h + 1) * DH]
            v = qkv[:, 2 * E + h * DH:2 * E + (h + 1) * DH]
            # q @ k^T via dot_general (contract last dims), no explicit transpose
            s = jax.lax.dot_general(q, k, (((1,), (1,)), ((), ())),
                                    preferred_element_type=jnp.float32)  # (NT, NT)
            s = s * scale + mask
            s = s - jnp.max(s, axis=-1, keepdims=True)
            p = jnp.exp(s)
            p = p * pl.reciprocal(jnp.sum(p, axis=-1, keepdims=True), approx=True)
            ctx_heads.append(jnp.dot(p, v, preferred_element_type=jnp.float32))
        ctx = jnp.concatenate(ctx_heads, axis=-1)                 # (NT, E)

        # single out-projection matmul per layer
        attn = jnp.dot(ctx, wo_ref[l],
                       preferred_element_type=jnp.float32) + b_o  # (NT, E)

        # ---- residual + norm1 (post-norm), feedforward (relu), residual + norm2 ----
        x = _layer_norm(x + attn, ln1g, ln1b)
        h1 = jnp.maximum(
            jnp.dot(x, w1_ref[l], preferred_element_type=jnp.float32) + b1, 0.0)
        ff = jnp.dot(h1, w2_ref[l], preferred_element_type=jnp.float32) + b2
        x = _layer_norm(x + ff, ln2g, ln2b)

    # ---- final LayerNorm ----
    rf = _ROWS_PER_LAYER * L
    x = _layer_norm(x, vec_ref[rf:rf + 1, 0:E], vec_ref[rf + 1:rf + 2, 0:E])

    # ---- mean pooler over T as one tiny matmul against a constant pooling matrix ----
    row_id = jax.lax.broadcasted_iota(jnp.int32, (N, NT), 0)       # batch index per row
    col_id = jax.lax.broadcasted_iota(jnp.int32, (N, NT), 1)       # flattened position
    lo = row_id * T
    pool = jnp.where((col_id >= lo) & (col_id < lo + T),
                     jnp.float32(1.0 / T), jnp.float32(0.0))       # (N, NT)
    pooled = jnp.dot(pool, x, preferred_element_type=jnp.float32)  # (N, E)

    # ---- output head ----
    o_ref[...] = jnp.dot(pooled, wout_ref[...],
                         preferred_element_type=jnp.float32) \
                 + vec_ref[rf + 2:rf + 3, 0:D_OUT]


# ---------------- wrapper ----------------

@jax.jit
def encoder_network_forward(tokens, prep):
    tok_col = tokens.reshape(NT, 1).astype(jnp.int32)
    tok_flat = tokens.reshape(NT)

    # Block-diagonal batch mask + key-padding bias, built once as a single
    # (NT, NT) additive mask so the kernel does flat (NT,*) attention.
    batch_ids = jnp.arange(NT, dtype=jnp.int32) // T
    same_batch = batch_ids[:, None] == batch_ids[None, :]
    key_ok = (tok_flat != PAD)[None, :]
    attn_mask = jnp.where(same_batch & key_ok,
                          jnp.float32(0.0), jnp.float32(NEG))      # (NT, NT)

    # PositionalEncoding buffer (constant; folded by XLA), tiled to (N*T, E)
    position = jnp.arange(T, dtype=jnp.float32)[:, None]
    div_term = jnp.exp(jnp.arange(0, E, 2, dtype=jnp.float32)
                       * (-math.log(10000.0) / E))
    pe = jnp.zeros((T, E), jnp.float32)
    pe = pe.at[:, 0::2].set(jnp.sin(position * div_term))
    pe = pe.at[:, 1::2].set(jnp.cos(position * div_term))
    pe_flat = jnp.tile(pe, (N, 1))                                 # (NT, E)

    # Concatenate PE and mask into one input (fewer DMA descriptors).
    pemask = jnp.concatenate([pe_flat, attn_mask], axis=1)         # (NT, E+NT)

    inputs = (tok_col, pemask, prep["vec"], prep["emb_scaled"],
              prep["wqkv"], prep["wo"], prep["w1"], prep["w2"],
              prep["w_out_t"])

    return pl.pallas_call(
        fused_encoder_kernel,
        in_specs=[pl.BlockSpec(memory_space=pltpu.MemorySpace.VMEM)
                  for _ in inputs],
        out_specs=pl.BlockSpec(memory_space=pltpu.MemorySpace.VMEM),
        out_shape=jax.ShapeDtypeStruct((N, D_OUT), jnp.float32),
    )(*inputs)


# ---------------- parameter init (PyTorch convention) + kernel-layout prep ----------------

def init_params(key):
    """PyTorch-convention parameters: Linear weights are (out_features, in_features)."""
    ks = jax.random.split(key, 4 + L)
    scale = 0.02

    def nrm(k, shape):
        return (scale * jax.random.normal(k, shape)).astype(jnp.float32)

    params = {
        "emb_table": nrm(ks[0], (V, E)),
        "final_ln_g": jnp.ones((1, E), jnp.float32),
        "final_ln_b": jnp.zeros((1, E), jnp.float32),
        "w_out": nrm(ks[1], (D_OUT, E)),
        "b_out": jnp.zeros((1, D_OUT), jnp.float32),
        "layers": [],
    }
    for l in range(L):
        lk = jax.random.split(ks[4 + l], 4)
        params["layers"].append({
            "wqkv": nrm(lk[0], (3 * E, E)),
            "bqkv": jnp.zeros((1, 3 * E), jnp.float32),
            "wo": nrm(lk[1], (E, E)),
            "bo": jnp.zeros((1, E), jnp.float32),
            "ln1_g": jnp.ones((1, E), jnp.float32),
            "ln1_b": jnp.zeros((1, E), jnp.float32),
            "w1": nrm(lk[2], (F, E)),
            "b1": jnp.zeros((1, F), jnp.float32),
            "w2": nrm(lk[3], (E, F)),
            "b2": jnp.zeros((1, E), jnp.float32),
            "ln2_g": jnp.ones((1, E), jnp.float32),
            "ln2_b": jnp.zeros((1, E), jnp.float32),
        })
    return params


def prepare_params(raw):
    """One-time conversion to the fused-kernel layout:
       * fold sqrt(d_model) into the embedding table,
       * pre-transpose every Linear weight to (in, out) (no in-kernel .T),
       * keep the QKV projection fused as a single (E, 3E) weight per layer,
       * pack every small bias / LayerNorm vector into ONE (rows, 128) table."""
    prep = {
        "emb_scaled": raw["emb_table"] * jnp.float32(math.sqrt(E)),   # (V, E)
        "w_out_t": raw["w_out"].T,                                    # (E, D_OUT)
    }

    def row(v):
        v = jnp.asarray(v, jnp.float32).reshape(-1)
        return jnp.pad(v, (0, 128 - v.shape[0]))

    wqkv_l, wo_l, w1_l, w2_l, vec_rows = [], [], [], [], []
    for l in range(L):
        lay = raw["layers"][l]
        wqkv_l.append(lay["wqkv"].T)         # (E, 3E): cols [0:E]=Q, [E:2E]=K, [2E:3E]=V
        wo_l.append(lay["wo"].T)             # (E, E)
        w1_l.append(lay["w1"].T)             # (E, F)
        w2_l.append(lay["w2"].T)             # (F, E)
        vec_rows += [row(lay["bqkv"]), row(lay["bo"]),
                     row(lay["ln1_g"]), row(lay["ln1_b"]),
                     row(lay["b1"]), row(lay["b2"]),
                     row(lay["ln2_g"]), row(lay["ln2_b"])]
    vec_rows += [row(raw["final_ln_g"]), row(raw["final_ln_b"]), row(raw["b_out"])]
    while len(vec_rows) < _VEC_ROWS_PAD:
        vec_rows.append(jnp.zeros((128,), jnp.float32))

    prep.update(
        vec=jnp.stack(vec_rows),             # (24, 128)
        wqkv=jnp.stack(wqkv_l),              # (L, E, 3E)
        wo=jnp.stack(wo_l),                  # (L, E, E)
        w1=jnp.stack(w1_l),                  # (L, E, F)
        w2=jnp.stack(w2_l),                  # (L, F, E)
    )
    return prep


if __name__ == "__main__":
    key = jax.random.PRNGKey(0)
    k_tok, k_par = jax.random.split(key)

    # tokens in [1, V), with a couple of explicit PAD positions in row 0
    tokens = jax.random.randint(k_tok, (N, T), 1, V, dtype=jnp.int32)
    tokens = tokens.at[0, -2:].set(PAD)

    raw_params = init_params(k_par)
    prep_params = prepare_params(raw_params)

    out = encoder_network_forward(tokens, prep_params)
    out = jax.block_until_ready(out)
    assert out.shape == (N, D_OUT)
    assert bool(jnp.all(jnp.isfinite(out)))
    print("KERNEL_OK")
</pallas_src>

<mosaic_0001>
module attributes {stable_mosaic.version = 11 : i64} {
  func.func @fused_encoder_kernel(%arg0: memref<16x1xi32, #tpu.memory_space<vmem>>, %arg1: memref<16x48xf32, #tpu.memory_space<vmem>>, %arg2: memref<24x128xf32, #tpu.memory_space<vmem>>, %arg3: memref<20x32xf32, #tpu.memory_space<vmem>>, %arg4: memref<2x32x96xf32, #tpu.memory_space<vmem>>, %arg5: memref<2x32x32xf32, #tpu.memory_space<vmem>>, %arg6: memref<2x32x64xf32, #tpu.memory_space<vmem>>, %arg7: memref<2x64x32xf32, #tpu.memory_space<vmem>>, %arg8: memref<32x16xf32, #tpu.memory_space<vmem>>, %arg9: memref<2x16xf32, #tpu.memory_space<vmem>>) attributes {dimension_semantics = [], scalar_prefetch = 0 : i64, scratch_operands = 0 : i64, tpu.core_type = #tpu.core_type<tc>} {
    %c0 = arith.constant 0 : index
    %c0_0 = arith.constant 0 : index
    %0 = vector.load %arg0[%c0, %c0_0] : memref<16x1xi32, #tpu.memory_space<vmem>>, vector<16x1xi32>
    %1 = tpu.iota {dimensions = array<i32: 1>} : vector<16x20xi32>
    %2 = vector.broadcast %0 : vector<16x1xi32> to vector<16x20xi32>
    %3 = arith.cmpi eq, %2, %1 : vector<16x20xi32>
    %4 = arith.extui %3 : vector<16x20xi1> to vector<16x20xi32>
    %5 = arith.sitofp %4 : vector<16x20xi32> to vector<16x20xf32>
    %c0_1 = arith.constant 0 : index
    %c0_2 = arith.constant 0 : index
    %6 = vector.load %arg1[%c0_1, %c0_2] : memref<16x48xf32, #tpu.memory_space<vmem>>, vector<16x32xf32>
    %c0_3 = arith.constant 0 : index
    %c32 = arith.constant 32 : index
    %7 = vector.load %arg1[%c0_3, %c32] : memref<16x48xf32, #tpu.memory_space<vmem>>, vector<16x16xf32>
    %c0_4 = arith.constant 0 : index
    %c0_5 = arith.constant 0 : index
    %8 = vector.load %arg3[%c0_4, %c0_5] : memref<20x32xf32, #tpu.memory_space<vmem>>, vector<20x32xf32>
    %cst = arith.constant dense<0.000000e+00> : vector<16x32xf32>
    %9 = tpu.matmul %5, %8, %cst {dimension_numbers = #tpu.dot_dimension_numbers<[1], [0], [0], [1], [0, 0, 1, 1], [], []>} : vector<16x20xf32>, vector<20x32xf32>, vector<16x32xf32> -> vector<16x32xf32>
    %10 = arith.addf %9, %6 : vector<16x32xf32>
    %c0_6 = arith.constant 0 : index
    %c0_7 = arith.constant 0 : index
    %11 = vector.load %arg2[%c0_6, %c0_7] : memref<24x128xf32, #tpu.memory_space<vmem>>, vector<1x96xf32>
    %c1 = arith.constant 1 : index
    %c0_8 = arith.constant 0 : index
    %12 = vector.load %arg2[%c1, %c0_8] : memref<24x128xf32, #tpu.memory_space<vmem>>, vector<1x32xf32>
    %c2 = arith.constant 2 : index
    %c0_9 = arith.constant 0 : index
    %13 = vector.load %arg2[%c2, %c0_9] : memref<24x128xf32, #tpu.memory_space<vmem>>, vector<1x32xf32>
    %c3 = arith.constant 3 : index
    %c0_10 = arith.constant 0 : index
    %14 = vector.load %arg2[%c3, %c0_10] : memref<24x128xf32, #tpu.memory_space<vmem>>, vector<1x32xf32>
    %c4 = arith.constant 4 : index
    %c0_11 = arith.constant 0 : index
    %15 = vector.load %arg2[%c4, %c0_11] : memref<24x128xf32, #tpu.memory_space<vmem>>, vector<1x64xf32>
    %c5 = arith.constant 5 : index
    %c0_12 = arith.constant 0 : index
    %16 = vector.load %arg2[%c5, %c0_12] : memref<24x128xf32, #tpu.memory_space<vmem>>, vector<1x32xf32>
    %c6 = arith.constant 6 : index
    %c0_13 = arith.constant 0 : index
    %17 = vector.load %arg2[%c6, %c0_13] : memref<24x128xf32, #tpu.memory_space<vmem>>, vector<1x32xf32>
    %c7 = arith.constant 7 : index
    %c0_14 = arith.constant 0 : index
    %18 = vector.load %arg2[%c7, %c0_14] : memref<24x128xf32, #tpu.memory_space<vmem>>, vector<1x32xf32>
    %c0_15 = arith.constant 0 : index
    %c0_16 = arith.constant 0 : index
    %c0_17 = arith.constant 0 : index
    %19 = vector.load %arg4[%c0_15, %c0_16, %c0_17] : memref<2x32x96xf32, #tpu.memory_space<vmem>>, vector<1x32x96xf32>
    %20 = vector.shape_cast %19 : vector<1x32x96xf32> to vector<32x96xf32>
    %cst_18 = arith.constant dense<0.000000e+00> : vector<16x96xf32>
    %21 = tpu.matmul %10, %20, %cst_18 {dimension_numbers = #tpu.dot_dimension_numbers<[1], [0], [0], [1], [0, 0, 1, 1], [], []>} : vector<16x32xf32>, vector<32x96xf32>, vector<16x96xf32> -> vector<16x96xf32>
    %22 = vector.broadcast %11 : vector<1x96xf32> to vector<16x96xf32>
    %23 = arith.addf %21, %22 : vector<16x96xf32>
    %24 = vector.extract_strided_slice %23 {offsets = [0, 0], sizes = [16, 8], strides = [1, 1]} : vector<16x96xf32> to vector<16x8xf32>
    %25 = vector.extract_strided_slice %23 {offsets = [0, 32], sizes = [16, 8], strides = [1, 1]} : vector<16x96xf32> to vector<16x8xf32>
    %26 = vector.extract_strided_slice %23 {offsets = [0, 64], sizes = [16, 8], strides = [1, 1]} : vector<16x96xf32> to vector<16x8xf32>
    %cst_19 = arith.constant dense<0.000000e+00> : vector<16x16xf32>
    %27 = tpu.matmul %24, %25, %cst_19 {dimension_numbers = #tpu.dot_dimension_numbers<[1], [1], [0], [0], [0, 0, 1, 0], [], []>} : vector<16x8xf32>, vector<16x8xf32>, vector<16x16xf32> -> vector<16x16xf32>
    %cst_20 = arith.constant 0.353553385 : f32
    %28 = vector.broadcast %cst_20 : f32 to vector<16x16xf32>
    %29 = arith.mulf %27, %28 : vector<16x16xf32>
    %30 = arith.addf %29, %7 : vector<16x16xf32>
    %cst_21 = arith.constant dense<0xFF800000> : vector<16xf32>
    %31 = vector.multi_reduction <maximumf>, %30, %cst_21 [1] : vector<16x16xf32> to vector<16xf32>
    %32 = vector.shape_cast %31 : vector<16xf32> to vector<16x1xf32>
    %33 = vector.broadcast %32 : vector<16x1xf32> to vector<16x16xf32>
    %34 = arith.subf %30, %33 : vector<16x16xf32>
    %35 = math.exp %34 : vector<16x16xf32>
    %cst_22 = arith.constant dense<0.000000e+00> : vector<16xf32>
    %36 = vector.multi_reduction <add>, %35, %cst_22 [1] : vector<16x16xf32> to vector<16xf32>
    %37 = vector.shape_cast %36 : vector<16xf32> to vector<16x1xf32>
    %38 = tpu.reciprocal %37 {approx = true} : vector<16x1xf32> -> vector<16x1xf32>
    %39 = vector.broadcast %38 : vector<16x1xf32> to vector<16x16xf32>
    %40 = arith.mulf %35, %39 : vector<16x16xf32>
    %cst_23 = arith.constant dense<0.000000e+00> : vector<16x8xf32>
    %41 = tpu.matmul %40, %26, %cst_23 {dimension_numbers = #tpu.dot_dimension_numbers<[1], [0], [0], [1], [0, 0, 1, 1], [], []>} : vector<16x16xf32>, vector<16x8xf32>, vector<16x8xf32> -> vector<16x8xf32>
    %42 = vector.extract_strided_slice %23 {offsets = [0, 8], sizes = [16, 8], strides = [1, 1]} : vector<16x96xf32> to vector<16x8xf32>
    %43 = vector.extract_strided_slice %23 {offsets = [0, 40], sizes = [16, 8], strides = [1, 1]} : vector<16x96xf32> to vector<16x8xf32>
    %44 = vector.extract_strided_slice %23 {offsets = [0, 72], sizes = [16, 8], strides = [1, 1]} : vector<16x96xf32> to vector<16x8xf32>
    %cst_24 = arith.constant dense<0.000000e+00> : vector<16x16xf32>
    %45 = tpu.matmul %42, %43, %cst_24 {dimension_numbers = #tpu.dot_dimension_numbers<[1], [1], [0], [0], [0, 0, 1, 0], [], []>} : vector<16x8xf32>, vector<16x8xf32>, vector<16x16xf32> -> vector<16x16xf32>
    %cst_25 = arith.constant 0.353553385 : f32
    %46 = vector.broadcast %cst_25 : f32 to vector<16x16xf32>
    %47 = arith.mulf %45, %46 : vector<16x16xf32>
    %48 = arith.addf %47, %7 : vector<16x16xf32>
    %cst_26 = arith.constant dense<0xFF800000> : vector<16xf32>
    %49 = vector.multi_reduction <maximumf>, %48, %cst_26 [1] : vector<16x16xf32> to vector<16xf32>
    %50 = vector.shape_cast %49 : vector<16xf32> to vector<16x1xf32>
    %51 = vector.broadcast %50 : vector<16x1xf32> to vector<16x16xf32>
    %52 = arith.subf %48, %51 : vector<16x16xf32>
    %53 = math.exp %52 : vector<16x16xf32>
    %cst_27 = arith.constant dense<0.000000e+00> : vector<16xf32>
    %54 = vector.multi_reduction <add>, %53, %cst_27 [1] : vector<16x16xf32> to vector<16xf32>
    %55 = vector.shape_cast %54 : vector<16xf32> to vector<16x1xf32>
    %56 = tpu.reciprocal %55 {approx = true} : vector<16x1xf32> -> vector<16x1xf32>
    %57 = vector.broadcast %56 : vector<16x1xf32> to vector<16x16xf32>
    %58 = arith.mulf %53, %57 : vector<16x16xf32>
    %cst_28 = arith.constant dense<0.000000e+00> : vector<16x8xf32>
    %59 = tpu.matmul %58, %44, %cst_28 {dimension_numbers = #tpu.dot_dimension_numbers<[1], [0], [0], [1], [0, 0, 1, 1], [], []>} : vector<16x16xf32>, vector<16x8xf32>, vector<16x8xf32> -> vector<16x8xf32>
    %60 = vector.extract_strided_slice %23 {offsets = [0, 16], sizes = [16, 8], strides = [1, 1]} : vector<16x96xf32> to vector<16x8xf32>
    %61 = vector.extract_strided_slice %23 {offsets = [0, 48], sizes = [16, 8], strides = [1, 1]} : vector<16x96xf32> to vector<16x8xf32>
    %62 = vector.extract_strided_slice %23 {offsets = [0, 80], sizes = [16, 8], strides = [1, 1]} : vector<16x96xf32> to vector<16x8xf32>
    %cst_29 = arith.constant dense<0.000000e+00> : vector<16x16xf32>
    %63 = tpu.matmul %60, %61, %cst_29 {dimension_numbers = #tpu.dot_dimension_numbers<[1], [1], [0], [0], [0, 0, 1, 0], [], []>} : vector<16x8xf32>, vector<16x8xf32>, vector<16x16xf32> -> vector<16x16xf32>
    %cst_30 = arith.constant 0.353553385 : f32
    %64 = vector.broadcast %cst_30 : f32 to vector<16x16xf32>
    %65 = arith.mulf %63, %64 : vector<16x16xf32>
    %66 = arith.addf %65, %7 : vector<16x16xf32>
    %cst_31 = arith.constant dense<0xFF800000> : vector<16xf32>
    %67 = vector.multi_reduction <maximumf>, %66, %cst_31 [1] : vector<16x16xf32> to vector<16xf32>
    %68 = vector.shape_cast %67 : vector<16xf32> to vector<16x1xf32>
    %69 = vector.broadcast %68 : vector<16x1xf32> to vector<16x16xf32>
    %70 = arith.subf %66, %69 : vector<16x16xf32>
    %71 = math.exp %70 : vector<16x16xf32>
    %cst_32 = arith.constant dense<0.000000e+00> : vector<16xf32>
    %72 = vector.multi_reduction <add>, %71, %cst_32 [1] : vector<16x16xf32> to vector<16xf32>
    %73 = vector.shape_cast %72 : vector<16xf32> to vector<16x1xf32>
    %74 = tpu.reciprocal %73 {approx = true} : vector<16x1xf32> -> vector<16x1xf32>
    %75 = vector.broadcast %74 : vector<16x1xf32> to vector<16x16xf32>
    %76 = arith.mulf %71, %75 : vector<16x16xf32>
    %cst_33 = arith.constant dense<0.000000e+00> : vector<16x8xf32>
    %77 = tpu.matmul %76, %62, %cst_33 {dimension_numbers = #tpu.dot_dimension_numbers<[1], [0], [0], [1], [0, 0, 1, 1], [], []>} : vector<16x16xf32>, vector<16x8xf32>, vector<16x8xf32> -> vector<16x8xf32>
    %78 = vector.extract_strided_slice %23 {offsets = [0, 24], sizes = [16, 8], strides = [1, 1]} : vector<16x96xf32> to vector<16x8xf32>
    %79 = vector.extract_strided_slice %23 {offsets = [0, 56], sizes = [16, 8], strides = [1, 1]} : vector<16x96xf32> to vector<16x8xf32>
    %80 = vector.extract_strided_slice %23 {offsets = [0, 88], sizes = [16, 8], strides = [1, 1]} : vector<16x96xf32> to vector<16x8xf32>
    %cst_34 = arith.constant dense<0.000000e+00> : vector<16x16xf32>
    %81 = tpu.matmul %78, %79, %cst_34 {dimension_numbers = #tpu.dot_dimension_numbers<[1], [1], [0], [0], [0, 0, 1, 0], [], []>} : vector<16x8xf32>, vector<16x8xf32>, vector<16x16xf32> -> vector<16x16xf32>
    %cst_35 = arith.constant 0.353553385 : f32
    %82 = vector.broadcast %cst_35 : f32 to vector<16x16xf32>
    %83 = arith.mulf %81, %82 : vector<16x16xf32>
    %84 = arith.addf %83, %7 : vector<16x16xf32>
    %cst_36 = arith.constant dense<0xFF800000> : vector<16xf32>
    %85 = vector.multi_reduction <maximumf>, %84, %cst_36 [1] : vector<16x16xf32> to vector<16xf32>
    %86 = vector.shape_cast %85 : vector<16xf32> to vector<16x1xf32>
    %87 = vector.broadcast %86 : vector<16x1xf32> to vector<16x16xf32>
    %88 = arith.subf %84, %87 : vector<16x16xf32>
    %89 = math.exp %88 : vector<16x16xf32>
    %cst_37 = arith.constant dense<0.000000e+00> : vector<16xf32>
    %90 = vector.multi_reduction <add>, %89, %cst_37 [1] : vector<16x16xf32> to vector<16xf32>
    %91 = vector.shape_cast %90 : vector<16xf32> to vector<16x1xf32>
    %92 = tpu.reciprocal %91 {approx = true} : vector<16x1xf32> -> vector<16x1xf32>
    %93 = vector.broadcast %92 : vector<16x1xf32> to vector<16x16xf32>
    %94 = arith.mulf %89, %93 : vector<16x16xf32>
    %cst_38 = arith.constant dense<0.000000e+00> : vector<16x8xf32>
    %95 = tpu.matmul %94, %80, %cst_38 {dimension_numbers = #tpu.dot_dimension_numbers<[1], [0], [0], [1], [0, 0, 1, 1], [], []>} : vector<16x16xf32>, vector<16x8xf32>, vector<16x8xf32> -> vector<16x8xf32>
    %96 = tpu.concatenate %41, %59, %77, %95 in 1 : vector<16x8xf32>, vector<16x8xf32>, vector<16x8xf32>, vector<16x8xf32> -> vector<16x32xf32>
    %c0_39 = arith.constant 0 : index
    %c0_40 = arith.constant 0 : index
    %c0_41 = arith.constant 0 : index
    %97 = vector.load %arg5[%c0_39, %c0_40, %c0_41] : memref<2x32x32xf32, #tpu.memory_space<vmem>>, vector<1x32x32xf32>
    %98 = vector.shape_cast %97 : vector<1x32x32xf32> to vector<32x32xf32>
    %cst_42 = arith.constant dense<0.000000e+00> : vector<16x32xf32>
    %99 = tpu.matmul %96, %98, %cst_42 {dimension_numbers = #tpu.dot_dimension_numbers<[1], [0], [0], [1], [0, 0, 1, 1], [], []>} : vector<16x32xf32>, vector<32x32xf32>, vector<16x32xf32> -> vector<16x32xf32>
    %100 = vector.broadcast %12 : vector<1x32xf32> to vector<16x32xf32>
    %101 = arith.addf %99, %100 : vector<16x32xf32>
    %102 = arith.addf %10, %101 : vector<16x32xf32>
    %cst_43 = arith.constant dense<0.000000e+00> : vector<16xf32>
    %103 = vector.multi_reduction <add>, %102, %cst_43 [1] : vector<16x32xf32> to vector<16xf32>
    %104 = vector.shape_cast %103 : vector<16xf32> to vector<16x1xf32>
    %cst_44 = arith.constant 3.200000e+01 : f32
    %105 = vector.broadcast %cst_44 : f32 to vector<16x1xf32>
    %106 = arith.divf %104, %105 : vector<16x1xf32>
    %107 = arith.mulf %102, %102 : vector<16x32xf32>
    %cst_45 = arith.constant dense<0.000000e+00> : vector<16xf32>
    %108 = vector.multi_reduction <add>, %107, %cst_45 [1] : vector<16x32xf32> to vector<16xf32>
    %109 = vector.shape_cast %108 : vector<16xf32> to vector<16x1xf32>
    %cst_46 = arith.constant 3.200000e+01 : f32
    %110 = vector.broadcast %cst_46 : f32 to vector<16x1xf32>
    %111 = arith.divf %109, %110 : vector<16x1xf32>
    %112 = arith.mulf %106, %106 : vector<16x1xf32>
    %113 = arith.subf %111, %112 : vector<16x1xf32>
    %114 = vector.broadcast %106 : vector<16x1xf32> to vector<16x32xf32>
    %115 = arith.subf %102, %114 : vector<16x32xf32>
    %cst_47 = arith.constant 9.99999974E-6 : f32
    %116 = vector.broadcast %cst_47 : f32 to vector<16x1xf32>
    %117 = arith.addf %113, %116 : vector<16x1xf32>
    %118 = math.rsqrt %117 : vector<16x1xf32>
    %119 = vector.broadcast %118 : vector<16x1xf32> to vector<16x32xf32>
    %120 = arith.mulf %115, %119 : vector<16x32xf32>
    %121 = vector.broadcast %13 : vector<1x32xf32> to vector<16x32xf32>
    %122 = arith.mulf %120, %121 : vector<16x32xf32>
    %123 = vector.broadcast %14 : vector<1x32xf32> to vector<16x32xf32>
    %124 = arith.addf %122, %123 : vector<16x32xf32>
    %c0_48 = arith.constant 0 : index
    %c0_49 = arith.constant 0 : index
    %c0_50 = arith.constant 0 : index
    %125 = vector.load %arg6[%c0_48, %c0_49, %c0_50] : memref<2x32x64xf32, #tpu.memory_space<vmem>>, vector<1x32x64xf32>
    %126 = vector.shape_cast %125 : vector<1x32x64xf32> to vector<32x64xf32>
    %cst_51 = arith.constant dense<0.000000e+00> : vector<16x64xf32>
    %127 = tpu.matmul %124, %126, %cst_51 {dimension_numbers = #tpu.dot_dimension_numbers<[1], [0], [0], [1], [0, 0, 1, 1], [], []>} : vector<16x32xf32>, vector<32x64xf32>, vector<16x64xf32> -> vector<16x64xf32>
    %128 = vector.broadcast %15 : vector<1x64xf32> to vector<16x64xf32>
    %129 = arith.addf %127, %128 : vector<16x64xf32>
    %cst_52 = arith.constant 0.000000e+00 : f32
    %130 = vector.broadcast %cst_52 : f32 to vector<16x64xf32>
    %131 = arith.maximumf %129, %130 : vector<16x64xf32>
    %c0_53 = arith.constant 0 : index
    %c0_54 = arith.constant 0 : index
    %c0_55 = arith.constant 0 : index
    %132 = vector.load %arg7[%c0_53, %c0_54, %c0_55] : memref<2x64x32xf32, #tpu.memory_space<vmem>>, vector<1x64x32xf32>
    %133 = vector.shape_cast %132 : vector<1x64x32xf32> to vector<64x32xf32>
    %cst_56 = arith.constant dense<0.000000e+00> : vector<16x32xf32>
    %134 = tpu.matmul %131, %133, %cst_56 {dimension_numbers = #tpu.dot_dimension_numbers<[1], [0], [0], [1], [0, 0, 1, 1], [], []>} : vector<16x64xf32>, vector<64x32xf32>, vector<16x32xf32> -> vector<16x32xf32>
    %135 = vector.broadcast %16 : vector<1x32xf32> to vector<16x32xf32>
    %136 = arith.addf %134, %135 : vector<16x32xf32>
    %137 = arith.addf %124, %136 : vector<16x32xf32>
    %cst_57 = arith.constant dense<0.000000e+00> : vector<16xf32>
    %138 = vector.multi_reduction <add>, %137, %cst_57 [1] : vector<16x32xf32> to vector<16xf32>
    %139 = vector.shape_cast %138 : vector<16xf32> to vector<16x1xf32>
    %cst_58 = arith.constant 3.200000e+01 : f32
    %140 = vector.broadcast %cst_58 : f32 to vector<16x1xf32>
    %141 = arith.divf %139, %140 : vector<16x1xf32>
    %142 = arith.mulf %137, %137 : vector<16x32xf32>
    %cst_59 = arith.constant dense<0.000000e+00> : vector<16xf32>
    %143 = vector.multi_reduction <add>, %142, %cst_59 [1] : vector<16x32xf32> to vector<16xf32>
    %144 = vector.shape_cast %143 : vector<16xf32> to vector<16x1xf32>
    %cst_60 = arith.constant 3.200000e+01 : f32
    %145 = vector.broadcast %cst_60 : f32 to vector<16x1xf32>
    %146 = arith.divf %144, %145 : vector<16x1xf32>
    %147 = arith.mulf %141, %141 : vector<16x1xf32>
    %148 = arith.subf %146, %147 : vector<16x1xf32>
    %149 = vector.broadcast %141 : vector<16x1xf32> to vector<16x32xf32>
    %150 = arith.subf %137, %149 : vector<16x32xf32>
    %cst_61 = arith.constant 9.99999974E-6 : f32
    %151 = vector.broadcast %cst_61 : f32 to vector<16x1xf32>
    %152 = arith.addf %148, %151 : vector<16x1xf32>
    %153 = math.rsqrt %152 : vector<16x1xf32>
    %154 = vector.broadcast %153 : vector<16x1xf32> to vector<16x32xf32>
    %155 = arith.mulf %150, %154 : vector<16x32xf32>
    %156 = vector.broadcast %17 : vector<1x32xf32> to vector<16x32xf32>
    %157 = arith.mulf %155, %156 : vector<16x32xf32>
    %158 = vector.broadcast %18 : vector<1x32xf32> to vector<16x32xf32>
    %159 = arith.addf %157, %158 : vector<16x32xf32>
    %c8 = arith.constant 8 : index
    %c0_62 = arith.constant 0 : index
    %160 = vector.load %arg2[%c8, %c0_62] : memref<24x128xf32, #tpu.memory_space<vmem>>, vector<1x96xf32>
    %c9 = arith.constant 9 : index
    %c0_63 = arith.constant 0 : index
    %161 = vector.load %arg2[%c9, %c0_63] : memref<24x128xf32, #tpu.memory_space<vmem>>, vector<1x32xf32>
    %c10 = arith.constant 10 : index
    %c0_64 = arith.constant 0 : index
    %162 = vector.load %arg2[%c10, %c0_64] : memref<24x128xf32, #tpu.memory_space<vmem>>, vector<1x32xf32>
    %c11 = arith.constant 11 : index
    %c0_65 = arith.constant 0 : index
    %163 = vector.load %arg2[%c11, %c0_65] : memref<24x128xf32, #tpu.memory_space<vmem>>, vector<1x32xf32>
    %c12 = arith.constant 12 : index
    %c0_66 = arith.constant 0 : index
    %164 = vector.load %arg2[%c12, %c0_66] : memref<24x128xf32, #tpu.memory_space<vmem>>, vector<1x64xf32>
    %c13 = arith.constant 13 : index
    %c0_67 = arith.constant 0 : index
    %165 = vector.load %arg2[%c13, %c0_67] : memref<24x128xf32, #tpu.memory_space<vmem>>, vector<1x32xf32>
    %c14 = arith.constant 14 : index
    %c0_68 = arith.constant 0 : index
    %166 = vector.load %arg2[%c14, %c0_68] : memref<24x128xf32, #tpu.memory_space<vmem>>, vector<1x32xf32>
    %c15 = arith.constant 15 : index
    %c0_69 = arith.constant 0 : index
    %167 = vector.load %arg2[%c15, %c0_69] : memref<24x128xf32, #tpu.memory_space<vmem>>, vector<1x32xf32>
    %c1_70 = arith.constant 1 : index
    %c0_71 = arith.constant 0 : index
    %c0_72 = arith.constant 0 : index
    %168 = vector.load %arg4[%c1_70, %c0_71, %c0_72] : memref<2x32x96xf32, #tpu.memory_space<vmem>>, vector<1x32x96xf32>
    %169 = vector.shape_cast %168 : vector<1x32x96xf32> to vector<32x96xf32>
    %cst_73 = arith.constant dense<0.000000e+00> : vector<16x96xf32>
    %170 = tpu.matmul %159, %169, %cst_73 {dimension_numbers = #tpu.dot_dimension_numbers<[1], [0], [0], [1], [0, 0, 1, 1], [], []>} : vector<16x32xf32>, vector<32x96xf32>, vector<16x96xf32> -> vector<16x96xf32>
    %171 = vector.broadcast %160 : vector<1x96xf32> to vector<16x96xf32>
    %172 = arith.addf %170, %171 : vector<16x96xf32>
    %173 = vector.extract_strided_slice %172 {offsets = [0, 0], sizes = [16, 8], strides = [1, 1]} : vector<16x96xf32> to vector<16x8xf32>
    %174 = vector.extract_strided_slice %172 {offsets = [0, 32], sizes = [16, 8], strides = [1, 1]} : vector<16x96xf32> to vector<16x8xf32>
    %175 = vector.extract_strided_slice %172 {offsets = [0, 64], sizes = [16, 8], strides = [1, 1]} : vector<16x96xf32> to vector<16x8xf32>
    %cst_74 = arith.constant dense<0.000000e+00> : vector<16x16xf32>
    %176 = tpu.matmul %173, %174, %cst_74 {dimension_numbers = #tpu.dot_dimension_numbers<[1], [1], [0], [0], [0, 0, 1, 0], [], []>} : vector<16x8xf32>, vector<16x8xf32>, vector<16x16xf32> -> vector<16x16xf32>
    %cst_75 = arith.constant 0.353553385 : f32
    %177 = vector.broadcast %cst_75 : f32 to vector<16x16xf32>
    %178 = arith.mulf %176, %177 : vector<16x16xf32>
    %179 = arith.addf %178, %7 : vector<16x16xf32>
    %cst_76 = arith.constant dense<0xFF800000> : vector<16xf32>
    %180 = vector.multi_reduction <maximumf>, %179, %cst_76 [1] : vector<16x16xf32> to vector<16xf32>
    %181 = vector.shape_cast %180 : vector<16xf32> to vector<16x1xf32>
    %182 = vector.broadcast %181 : vector<16x1xf32> to vector<16x16xf32>
    %183 = arith.subf %179, %182 : vector<16x16xf32>
    %184 = math.exp %183 : vector<16x16xf32>
    %cst_77 = arith.constant dense<0.000000e+00> : vector<16xf32>
    %185 = vector.multi_reduction <add>, %184, %cst_77 [1] : vector<16x16xf32> to vector<16xf32>
    %186 = vector.shape_cast %185 : vector<16xf32> to vector<16x1xf32>
    %187 = tpu.reciprocal %186 {approx = true} : vector<16x1xf32> -> vector<16x1xf32>
    %188 = vector.broadcast %187 : vector<16x1xf32> to vector<16x16xf32>
    %189 = arith.mulf %184, %188 : vector<16x16xf32>
    %cst_78 = arith.constant dense<0.000000e+00> : vector<16x8xf32>
    %190 = tpu.matmul %189, %175, %cst_78 {dimension_numbers = #tpu.dot_dimension_numbers<[1], [0], [0], [1], [0, 0, 1, 1], [], []>} : vector<16x16xf32>, vector<16x8xf32>, vector<16x8xf32> -> vector<16x8xf32>
    %191 = vector.extract_strided_slice %172 {offsets = [0, 8], sizes = [16, 8], strides = [1, 1]} : vector<16x96xf32> to vector<16x8xf32>
    %192 = vector.extract_strided_slice %172 {offsets = [0, 40], sizes = [16, 8], strides = [1, 1]} : vector<16x96xf32> to vector<16x8xf32>
    %193 = vector.extract_strided_slice %172 {offsets = [0, 72], sizes = [16, 8], strides = [1, 1]} : vector<16x96xf32> to vector<16x8xf32>
    %cst_79 = arith.constant dense<0.000000e+00> : vector<16x16xf32>
    %194 = tpu.matmul %191, %192, %cst_79 {dimension_numbers = #tpu.dot_dimension_numbers<[1], [1], [0], [0], [0, 0, 1, 0], [], []>} : vector<16x8xf32>, vector<16x8xf32>, vector<16x16xf32> -> vector<16x16xf32>
    %cst_80 = arith.constant 0.353553385 : f32
    %195 = vector.broadcast %cst_80 : f32 to vector<16x16xf32>
    %196 = arith.mulf %194, %195 : vector<16x16xf32>
    %197 = arith.addf %196, %7 : vector<16x16xf32>
    %cst_81 = arith.constant dense<0xFF800000> : vector<16xf32>
    %198 = vector.multi_reduction <maximumf>, %197, %cst_81 [1] : vector<16x16xf32> to vector<16xf32>
    %199 = vector.shape_cast %198 : vector<16xf32> to vector<16x1xf32>
    %200 = vector.broadcast %199 : vector<16x1xf32> to vector<16x16xf32>
    %201 = arith.subf %197, %200 : vector<16x16xf32>
    %202 = math.exp %201 : vector<16x16xf32>
    %cst_82 = arith.constant dense<0.000000e+00> : vector<16xf32>
    %203 = vector.multi_reduction <add>, %202, %cst_82 [1] : vector<16x16xf32> to vector<16xf32>
    %204 = vector.shape_cast %203 : vector<16xf32> to vector<16x1xf32>
    %205 = tpu.reciprocal %204 {approx = true} : vector<16x1xf32> -> vector<16x1xf32>
    %206 = vector.broadcast %205 : vector<16x1xf32> to vector<16x16xf32>
    %207 = arith.mulf %202, %206 : vector<16x16xf32>
    %cst_83 = arith.constant dense<0.000000e+00> : vector<16x8xf32>
    %208 = tpu.matmul %207, %193, %cst_83 {dimension_numbers = #tpu.dot_dimension_numbers<[1], [0], [0], [1], [0, 0, 1, 1], [], []>} : vector<16x16xf32>, vector<16x8xf32>, vector<16x8xf32> -> vector<16x8xf32>
    %209 = vector.extract_strided_slice %172 {offsets = [0, 16], sizes = [16, 8], strides = [1, 1]} : vector<16x96xf32> to vector<16x8xf32>
    %210 = vector.extract_strided_slice %172 {offsets = [0, 48], sizes = [16, 8], strides = [1, 1]} : vector<16x96xf32> to vector<16x8xf32>
    %211 = vector.extract_strided_slice %172 {offsets = [0, 80], sizes = [16, 8], strides = [1, 1]} : vector<16x96xf32> to vector<16x8xf32>
    %cst_84 = arith.constant dense<0.000000e+00> : vector<16x16xf32>
    %212 = tpu.matmul %209, %210, %cst_84 {dimension_numbers = #tpu.dot_dimension_numbers<[1], [1], [0], [0], [0, 0, 1, 0], [], []>} : vector<16x8xf32>, vector<16x8xf32>, vector<16x16xf32> -> vector<16x16xf32>
    %cst_85 = arith.constant 0.353553385 : f32
    %213 = vector.broadcast %cst_85 : f32 to vector<16x16xf32>
    %214 = arith.mulf %212, %213 : vector<16x16xf32>
    %215 = arith.addf %214, %7 : vector<16x16xf32>
    %cst_86 = arith.constant dense<0xFF800000> : vector<16xf32>
    %216 = vector.multi_reduction <maximumf>, %215, %cst_86 [1] : vector<16x16xf32> to vector<16xf32>
    %217 = vector.shape_cast %216 : vector<16xf32> to vector<16x1xf32>
    %218 = vector.broadcast %217 : vector<16x1xf32> to vector<16x16xf32>
    %219 = arith.subf %215, %218 : vector<16x16xf32>
    %220 = math.exp %219 : vector<16x16xf32>
    %cst_87 = arith.constant dense<0.000000e+00> : vector<16xf32>
    %221 = vector.multi_reduction <add>, %220, %cst_87 [1] : vector<16x16xf32> to vector<16xf32>
    %222 = vector.shape_cast %221 : vector<16xf32> to vector<16x1xf32>
    %223 = tpu.reciprocal %222 {approx = true} : vector<16x1xf32> -> vector<16x1xf32>
    %224 = vector.broadcast %223 : vector<16x1xf32> to vector<16x16xf32>
    %225 = arith.mulf %220, %224 : vector<16x16xf32>
    %cst_88 = arith.constant dense<0.000000e+00> : vector<16x8xf32>
    %226 = tpu.matmul %225, %211, %cst_88 {dimension_numbers = #tpu.dot_dimension_numbers<[1], [0], [0], [1], [0, 0, 1, 1], [], []>} : vector<16x16xf32>, vector<16x8xf32>, vector<16x8xf32> -> vector<16x8xf32>
    %227 = vector.extract_strided_slice %172 {offsets = [0, 24], sizes = [16, 8], strides = [1, 1]} : vector<16x96xf32> to vector<16x8xf32>
    %228 = vector.extract_strided_slice %172 {offsets = [0, 56], sizes = [16, 8], strides = [1, 1]} : vector<16x96xf32> to vector<16x8xf32>
    %229 = vector.extract_strided_slice %172 {offsets = [0, 88], sizes = [16, 8], strides = [1, 1]} : vector<16x96xf32> to vector<16x8xf32>
    %cst_89 = arith.constant dense<0.000000e+00> : vector<16x16xf32>
    %230 = tpu.matmul %227, %228, %cst_89 {dimension_numbers = #tpu.dot_dimension_numbers<[1], [1], [0], [0], [0, 0, 1, 0], [], []>} : vector<16x8xf32>, vector<16x8xf32>, vector<16x16xf32> -> vector<16x16xf32>
    %cst_90 = arith.constant 0.353553385 : f32
    %231 = vector.broadcast %cst_90 : f32 to vector<16x16xf32>
    %232 = arith.mulf %230, %231 : vector<16x16xf32>
    %233 = arith.addf %232, %7 : vector<16x16xf32>
    %cst_91 = arith.constant dense<0xFF800000> : vector<16xf32>
    %234 = vector.multi_reduction <maximumf>, %233, %cst_91 [1] : vector<16x16xf32> to vector<16xf32>
    %235 = vector.shape_cast %234 : vector<16xf32> to vector<16x1xf32>
    %236 = vector.broadcast %235 : vector<16x1xf32> to vector<16x16xf32>
    %237 = arith.subf %233, %236 : vector<16x16xf32>
    %238 = math.exp %237 : vector<16x16xf32>
    %cst_92 = arith.constant dense<0.000000e+00> : vector<16xf32>
    %239 = vector.multi_reduction <add>, %238, %cst_92 [1] : vector<16x16xf32> to vector<16xf32>
    %240 = vector.shape_cast %239 : vector<16xf32> to vector<16x1xf32>
    %241 = tpu.reciprocal %240 {approx = true} : vector<16x1xf32> -> vector<16x1xf32>
    %242 = vector.broadcast %241 : vector<16x1xf32> to vector<16x16xf32>
    %243 = arith.mulf %238, %242 : vector<16x16xf32>
    %cst_93 = arith.constant dense<0.000000e+00> : vector<16x8xf32>
    %244 = tpu.matmul %243, %229, %cst_93 {dimension_numbers = #tpu.dot_dimension_numbers<[1], [0], [0], [1], [0, 0, 1, 1], [], []>} : vector<16x16xf32>, vector<16x8xf32>, vector<16x8xf32> -> vector<16x8xf32>
    %245 = tpu.concatenate %190, %208, %226, %244 in 1 : vector<16x8xf32>, vector<16x8xf32>, vector<16x8xf32>, vector<16x8xf32> -> vector<16x32xf32>
    %c1_94 = arith.constant 1 : index
    %c0_95 = arith.constant 0 : index
    %c0_96 = arith.constant 0 : index
    %246 = vector.load %arg5[%c1_94, %c0_95, %c0_96] : memref<2x32x32xf32, #tpu.memory_space<vmem>>, vector<1x32x32xf32>
    %247 = vector.shape_cast %246 : vector<1x32x32xf32> to vector<32x32xf32>
    %cst_97 = arith.constant dense<0.000000e+00> : vector<16x32xf32>
    %248 = tpu.matmul %245, %247, %cst_97 {dimension_numbers = #tpu.dot_dimension_numbers<[1], [0], [0], [1], [0, 0, 1, 1], [], []>} : vector<16x32xf32>, vector<32x32xf32>, vector<16x32xf32> -> vector<16x32xf32>
    %249 = vector.broadcast %161 : vector<1x32xf32> to vector<16x32xf32>
    %250 = arith.addf %248, %249 : vector<16x32xf32>
    %251 = arith.addf %159, %250 : vector<16x32xf32>
    %cst_98 = arith.constant dense<0.000000e+00> : vector<16xf32>
    %252 = vector.multi_reduction <add>, %251, %cst_98 [1] : vector<16x32xf32> to vector<16xf32>
    %253 = vector.shape_cast %252 : vector<16xf32> to vector<16x1xf32>
    %cst_99 = arith.constant 3.200000e+01 : f32
    %254 = vector.broadcast %cst_99 : f32 to vector<16x1xf32>
    %255 = arith.divf %253, %254 : vector<16x1xf32>
    %256 = arith.mulf %251, %251 : vector<16x32xf32>
    %cst_100 = arith.constant dense<0.000000e+00> : vector<16xf32>
    %257 = vector.multi_reduction <add>, %256, %cst_100 [1] : vector<16x32xf32> to vector<16xf32>
    %258 = vector.shape_cast %257 : vector<16xf32> to vector<16x1xf32>
    %cst_101 = arith.constant 3.200000e+01 : f32
    %259 = vector.broadcast %cst_101 : f32 to vector<16x1xf32>
    %260 = arith.divf %258, %259 : vector<16x1xf32>
    %261 = arith.mulf %255, %255 : vector<16x1xf32>
    %262 = arith.subf %260, %261 : vector<16x1xf32>
    %263 = vector.broadcast %255 : vector<16x1xf32> to vector<16x32xf32>
    %264 = arith.subf %251, %263 : vector<16x32xf32>
    %cst_102 = arith.constant 9.99999974E-6 : f32
    %265 = vector.broadcast %cst_102 : f32 to vector<16x1xf32>
    %266 = arith.addf %262, %265 : vector<16x1xf32>
    %267 = math.rsqrt %266 : vector<16x1xf32>
    %268 = vector.broadcast %267 : vector<16x1xf32> to vector<16x32xf32>
    %269 = arith.mulf %264, %268 : vector<16x32xf32>
    %270 = vector.broadcast %162 : vector<1x32xf32> to vector<16x32xf32>
    %271 = arith.mulf %269, %270 : vector<16x32xf32>
    %272 = vector.broadcast %163 : vector<1x32xf32> to vector<16x32xf32>
    %273 = arith.addf %271, %272 : vector<16x32xf32>
    %c1_103 = arith.constant 1 : index
    %c0_104 = arith.constant 0 : index
    %c0_105 = arith.constant 0 : index
    %274 = vector.load %arg6[%c1_103, %c0_104, %c0_105] : memref<2x32x64xf32, #tpu.memory_space<vmem>>, vector<1x32x64xf32>
    %275 = vector.shape_cast %274 : vector<1x32x64xf32> to vector<32x64xf32>
    %cst_106 = arith.constant dense<0.000000e+00> : vector<16x64xf32>
    %276 = tpu.matmul %273, %275, %cst_106 {dimension_numbers = #tpu.dot_dimension_numbers<[1], [0], [0], [1], [0, 0, 1, 1], [], []>} : vector<16x32xf32>, vector<32x64xf32>, vector<16x64xf32> -> vector<16x64xf32>
    %277 = vector.broadcast %164 : vector<1x64xf32> to vector<16x64xf32>
    %278 = arith.addf %276, %277 : vector<16x64xf32>
    %cst_107 = arith.constant 0.000000e+00 : f32
    %279 = vector.broadcast %cst_107 : f32 to vector<16x64xf32>
    %280 = arith.maximumf %278, %279 : vector<16x64xf32>
    %c1_108 = arith.constant 1 : index
    %c0_109 = arith.constant 0 : index
    %c0_110 = arith.constant 0 : index
    %281 = vector.load %arg7[%c1_108, %c0_109, %c0_110] : memref<2x64x32xf32, #tpu.memory_space<vmem>>, vector<1x64x32xf32>
    %282 = vector.shape_cast %281 : vector<1x64x32xf32> to vector<64x32xf32>
    %cst_111 = arith.constant dense<0.000000e+00> : vector<16x32xf32>
    %283 = tpu.matmul %280, %282, %cst_111 {dimension_numbers = #tpu.dot_dimension_numbers<[1], [0], [0], [1], [0, 0, 1, 1], [], []>} : vector<16x64xf32>, vector<64x32xf32>, vector<16x32xf32> -> vector<16x32xf32>
    %284 = vector.broadcast %165 : vector<1x32xf32> to vector<16x32xf32>
    %285 = arith.addf %283, %284 : vector<16x32xf32>
    %286 = arith.addf %273, %285 : vector<16x32xf32>
    %cst_112 = arith.constant dense<0.000000e+00> : vector<16xf32>
    %287 = vector.multi_reduction <add>, %286, %cst_112 [1] : vector<16x32xf32> to vector<16xf32>
    %288 = vector.shape_cast %287 : vector<16xf32> to vector<16x1xf32>
    %cst_113 = arith.constant 3.200000e+01 : f32
    %289 = vector.broadcast %cst_113 : f32 to vector<16x1xf32>
    %290 = arith.divf %288, %289 : vector<16x1xf32>
    %291 = arith.mulf %286, %286 : vector<16x32xf32>
    %cst_114 = arith.constant dense<0.000000e+00> : vector<16xf32>
    %292 = vector.multi_reduction <add>, %291, %cst_114 [1] : vector<16x32xf32> to vector<16xf32>
    %293 = vector.shape_cast %292 : vector<16xf32> to vector<16x1xf32>
    %cst_115 = arith.constant 3.200000e+01 : f32
    %294 = vector.broadcast %cst_115 : f32 to vector<16x1xf32>
    %295 = arith.divf %293, %294 : vector<16x1xf32>
    %296 = arith.mulf %290, %290 : vector<16x1xf32>
    %297 = arith.subf %295, %296 : vector<16x1xf32>
    %298 = vector.broadcast %290 : vector<16x1xf32> to vector<16x32xf32>
    %299 = arith.subf %286, %298 : vector<16x32xf32>
    %cst_116 = arith.constant 9.99999974E-6 : f32
    %300 = vector.broadcast %cst_116 : f32 to vector<16x1xf32>
    %301 = arith.addf %297, %300 : vector<16x1xf32>
    %302 = math.rsqrt %301 : vector<16x1xf32>
    %303 = vector.broadcast %302 : vector<16x1xf32> to vector<16x32xf32>
    %304 = arith.mulf %299, %303 : vector<16x32xf32>
    %305 = vector.broadcast %166 : vector<1x32xf32> to vector<16x32xf32>
    %306 = arith.mulf %304, %305 : vector<16x32xf32>
    %307 = vector.broadcast %167 : vector<1x32xf32> to vector<16x32xf32>
    %308 = arith.addf %306, %307 : vector<16x32xf32>
    %c16 = arith.constant 16 : index
    %c0_117 = arith.constant 0 : index
    %309 = vector.load %arg2[%c16, %c0_117] : memref<24x128xf32, #tpu.memory_space<vmem>>, vector<1x32xf32>
    %c17 = arith.constant 17 : index
    %c0_118 = arith.constant 0 : index
    %310 = vector.load %arg2[%c17, %c0_118] : memref<24x128xf32, #tpu.memory_space<vmem>>, vector<1x32xf32>
    %cst_119 = arith.constant dense<0.000000e+00> : vector<16xf32>
    %311 = vector.multi_reduction <add>, %308, %cst_119 [1] : vector<16x32xf32> to vector<16xf32>
    %312 = vector.shape_cast %311 : vector<16xf32> to vector<16x1xf32>
    %cst_120 = arith.constant 3.200000e+01 : f32
    %313 = vector.broadcast %cst_120 : f32 to vector<16x1xf32>
    %314 = arith.divf %312, %313 : vector<16x1xf32>
    %315 = arith.mulf %308, %308 : vector<16x32xf32>
    %cst_121 = arith.constant dense<0.000000e+00> : vector<16xf32>
    %316 = vector.multi_reduction <add>, %315, %cst_121 [1] : vector<16x32xf32> to vector<16xf32>
    %317 = vector.shape_cast %316 : vector<16xf32> to vector<16x1xf32>
    %cst_122 = arith.constant 3.200000e+01 : f32
    %318 = vector.broadcast %cst_122 : f32 to vector<16x1xf32>
    %319 = arith.divf %317, %318 : vector<16x1xf32>
    %320 = arith.mulf %314, %314 : vector<16x1xf32>
    %321 = arith.subf %319, %320 : vector<16x1xf32>
    %322 = vector.broadcast %314 : vector<16x1xf32> to vector<16x32xf32>
    %323 = arith.subf %308, %322 : vector<16x32xf32>
    %cst_123 = arith.constant 9.99999974E-6 : f32
    %324 = vector.broadcast %cst_123 : f32 to vector<16x1xf32>
    %325 = arith.addf %321, %324 : vector<16x1xf32>
    %326 = math.rsqrt %325 : vector<16x1xf32>
    %327 = vector.broadcast %326 : vector<16x1xf32> to vector<16x32xf32>
    %328 = arith.mulf %323, %327 : vector<16x32xf32>
    %329 = vector.broadcast %309 : vector<1x32xf32> to vector<16x32xf32>
    %330 = arith.mulf %328, %329 : vector<16x32xf32>
    %331 = vector.broadcast %310 : vector<1x32xf32> to vector<16x32xf32>
    %332 = arith.addf %330, %331 : vector<16x32xf32>
    %333 = tpu.iota {dimensions = array<i32: 0>} : vector<2x16xi32>
    %334 = tpu.iota {dimensions = array<i32: 1>} : vector<2x16xi32>
    %c8_i32 = arith.constant 8 : i32
    %335 = vector.broadcast %c8_i32 : i32 to vector<2x16xi32>
    %336 = arith.muli %333, %335 : vector<2x16xi32>
    %337 = arith.cmpi sge, %334, %336 : vector<2x16xi32>
    %c8_i32_124 = arith.constant 8 : i32
    %338 = vector.broadcast %c8_i32_124 : i32 to vector<2x16xi32>
    %339 = arith.addi %336, %338 : vector<2x16xi32>
    %340 = arith.cmpi slt, %334, %339 : vector<2x16xi32>
    %341 = arith.andi %337, %340 : vector<2x16xi1>
    %cst_125 = arith.constant 1.250000e-01 : f32
    %cst_126 = arith.constant 0.000000e+00 : f32
    %342 = vector.broadcast %cst_125 : f32 to vector<2x16xf32>
    %343 = vector.broadcast %cst_126 : f32 to vector<2x16xf32>
    %344 = arith.select %341, %342, %343 : vector<2x16xi1>, vector<2x16xf32>
    %cst_127 = arith.constant dense<0.000000e+00> : vector<2x32xf32>
    %345 = tpu.matmul %344, %332, %cst_127 {dimension_numbers = #tpu.dot_dimension_numbers<[1], [0], [0], [1], [0, 0, 1, 1], [], []>} : vector<2x16xf32>, vector<16x32xf32>, vector<2x32xf32> -> vector<2x32xf32>
    %c0_128 = arith.constant 0 : index
    %c0_129 = arith.constant 0 : index
    %346 = vector.load %arg8[%c0_128, %c0_129] : memref<32x16xf32, #tpu.memory_space<vmem>>, vector<32x16xf32>
    %cst_130 = arith.constant dense<0.000000e+00> : vector<2x16xf32>
    %347 = tpu.matmul %345, %346, %cst_130 {dimension_numbers = #tpu.dot_dimension_numbers<[1], [0], [0], [1], [0, 0, 1, 1], [], []>} : vector<2x32xf32>, vector<32x16xf32>, vector<2x16xf32> -> vector<2x16xf32>
    %c18 = arith.constant 18 : index
    %c0_131 = arith.constant 0 : index
    %348 = vector.load %arg2[%c18, %c0_131] : memref<24x128xf32, #tpu.memory_space<vmem>>, vector<1x16xf32>
    %349 = vector.broadcast %348 : vector<1x16xf32> to vector<2x16xf32>
    %350 = arith.addf %347, %349 : vector<2x16xf32>
    %c0_132 = arith.constant 0 : index
    %c0_133 = arith.constant 0 : index
    %351 = vector.load %arg9[%c0_132, %c0_133] : memref<2x16xf32, #tpu.memory_space<vmem>>, vector<2x16xf32>
    tpu.vector_store %arg9[%c0_132, %c0_133], %350 {strides = array<i32>} : memref<2x16xf32, #tpu.memory_space<vmem>>, vector<2x16xf32>,
    return
  }
}

</mosaic_0001>

<llo_original>
// kernel: encoder_network_forward.1
$region0: #{encoder_network_forward.1}
  #allocation0 [shape = 'u32[]', space=smem, size = 0x4, offset = 0x4, fixed_abs, tag = 'smem constant byte address 0x4 - core index']
  #allocation1 [shape = 'u32[72,128]{1,0:T(1,128)}', space=vmem, size = 0x9000, scoped, tag = 'internal scratch']
  %s0 = inlined_call_operand.vmem [shape: s32[16,1], index: 0, kind: input, shape index: {}]
  %s1 = inlined_call_operand.vmem [shape: f32[16,48], index: 1, kind: input, shape index: {}]
  %s2 = inlined_call_operand.vmem [shape: f32[24,128], index: 2, kind: input, shape index: {}]
  %s3 = inlined_call_operand.vmem [shape: f32[20,32], index: 3, kind: input, shape index: {}]
  %s4 = inlined_call_operand.vmem [shape: f32[2,32,96], index: 4, kind: input, shape index: {}]
  %s5 = inlined_call_operand.vmem [shape: f32[2,32,32], index: 5, kind: input, shape index: {}]
  %s6 = inlined_call_operand.vmem [shape: f32[2,32,64], index: 6, kind: input, shape index: {}]
  %s7 = inlined_call_operand.vmem [shape: f32[2,64,32], index: 7, kind: input, shape index: {}]
  %s8 = inlined_call_operand.vmem [shape: f32[32,16], index: 8, kind: input, shape index: {}]
  %s9 = inlined_call_operand.hbm [shape: f32[2,16], index: 9, kind: output, shape index: {}]
  %s10 = sld [smem:[#allocation0]]
  $region46: #{encoder_network_forward.1} parent=0
    _
  %s12 = ssub.s32 1, %s10
  %s13 = scalar_select 0, %s12, %s10
  $region1: #{encoder_network_forward.1} parent=0
    #allocation2 [shape = 'u8[1024]{0}', space=vmem, size = 0x400, scoped, tag = 'output window, operand 0, single buffered']
    #allocation3 [shape = 's32[1]{0}', space=sflag, size = 0x4, scoped, tag = 'scoped memory for encoder_network_forward.1']
    %14 = vsyncpa [#allocation3], 0
    // Predicated region
    $region2: #{encoder_network_forward.1} parent=1 // pred_check
      _
    $region3: #{encoder_network_forward.1} parent=1 // pred_check_branch
      %16 = sbr.rel (0) target = $region5
    $region4: #{encoder_network_forward.1} parent=1 // pred_region
      _
    $region5: #{encoder_network_forward.1} parent=1 // pred_fallthru
      _
    // Predicated region
    $region6: #{encoder_network_forward.1} parent=1 // pred_check
      _
    $region7: #{encoder_network_forward.1} parent=1 // pred_check_branch
      %18 = sbr.rel (0) target = $region9
    $region8: #{encoder_network_forward.1} parent=1 // pred_region
      _
    $region9: #{encoder_network_forward.1} parent=1 // pred_fallthru
      _
    // Predicated region
    $region10: #{encoder_network_forward.1} parent=1 // pred_check
      _
    $region11: #{encoder_network_forward.1} parent=1 // pred_check_branch
      %20 = sbr.rel (0) target = $region13
    $region12: #{encoder_network_forward.1} parent=1 // pred_region
      _
    $region13: #{encoder_network_forward.1} parent=1 // pred_fallthru
      _
    // Predicated region
    $region14: #{encoder_network_forward.1} parent=1 // pred_check
      _
    $region15: #{encoder_network_forward.1} parent=1 // pred_check_branch
      %22 = sbr.rel (0) target = $region17
    $region16: #{encoder_network_forward.1} parent=1 // pred_region
      _
    $region17: #{encoder_network_forward.1} parent=1 // pred_fallthru
      _
    // Predicated region
    $region18: #{encoder_network_forward.1} parent=1 // pred_check
      _
    $region19: #{encoder_network_forward.1} parent=1 // pred_check_branch
      %24 = sbr.rel (0) target = $region21
    $region20: #{encoder_network_forward.1} parent=1 // pred_region
      _
    $region21: #{encoder_network_forward.1} parent=1 // pred_fallthru
      _
    // Predicated region
    $region22: #{encoder_network_forward.1} parent=1 // pred_check
      _
    $region23: #{encoder_network_forward.1} parent=1 // pred_check_branch
      %26 = sbr.rel (0) target = $region25
    $region24: #{encoder_network_forward.1} parent=1 // pred_region
      _
    $region25: #{encoder_network_forward.1} parent=1 // pred_fallthru
      _
    // Predicated region
    $region26: #{encoder_network_forward.1} parent=1 // pred_check
      _
    $region27: #{encoder_network_forward.1} parent=1 // pred_check_branch
      %28 = sbr.rel (0) target = $region29
    $region28: #{encoder_network_forward.1} parent=1 // pred_region
      _
    $region29: #{encoder_network_forward.1} parent=1 // pred_fallthru
      _
    // Predicated region
    $region30: #{encoder_network_forward.1} parent=1 // pred_check
      _
    $region31: #{encoder_network_forward.1} parent=1 // pred_check_branch
      %30 = sbr.rel (0) target = $region33
    $region32: #{encoder_network_forward.1} parent=1 // pred_region
      _
    $region33: #{encoder_network_forward.1} parent=1 // pred_fallthru
      _
    // Predicated region
    $region34: #{encoder_network_forward.1} parent=1 // pred_check
      _
    $region35: #{encoder_network_forward.1} parent=1 // pred_check_branch
      %32 = sbr.rel (0) target = $region37
    $region36: #{encoder_network_forward.1} parent=1 // pred_region
      _
    $region37: #{encoder_network_forward.1} parent=1 // pred_fallthru
      _
    %v33 = vld [vmem:[%s0] sm:$0xff]
    %v34 = vld [vmem:[%s0 + $0x8] sm:$0xff]
    %v35 = vlaneseq
    %v36 = vand.u32 %v35, 127
    %37 = vset.pattern.permute.xlu0 0
    %38 = vperm.xlu0 %37, %v33
    %v39 = vpop.permute.xlu0 %38
    %40 = vset.pattern.permute.xlu0 0
    %41 = vperm.xlu0 %40, %v34
    %v42 = vpop.permute.xlu0 %41
    %vm43 = vcmp.eq.s32.totalorder %v39, %v36
    %vm44 = vcmp.eq.s32.totalorder %v42, %v36
    %v45 = vsel %vm43, 1, 0
    %v46 = vsel %vm44, 1, 0
    %v47 = vcvt.s32.f32 %v45
    %v48 = vcvt.s32.f32 %v46
    %v49 = vld [vmem:[%s1] sm:$0xff]
    %v50 = vld [vmem:[%s1 + $0x8] sm:$0xff]
    %v51 = vld [vmem:[%s3] sm:$0xff]
    %v52 = vld [vmem:[%s3 + $0x8] sm:$0xff]
    %v53 = vld [vmem:[%s3 + $0x10] sm:$0xf]
    %vm54 = vcmask 162816
    %v56 = vsel %vm54, %v47, 0
    %v59 = vsel %vm54, %v48, 0
    %vm61 = vcmask 1043456
    %v63 = vsel %vm61, %v53, 0
    %65 = vmatpush.msra.mxu0 0.0
    %66 = vmatpush.msra.mxu0 0.0
    %67 = vmatpush.msra.mxu0 0.0
    %68 = vmatpush.msra.mxu0 0.0
    %69 = vmatpush.msra.mxu0 0.0
    %70 = vmatpush.msra.mxu0 0.0
    %71 = vmatpush.msra.mxu0 0.0
    %72 = vmatpush.msra.mxu0 0.0
    %73 = vmatpush.msra.mxu0 0.0
    %74 = vmatpush.msra.mxu0 0.0
    %75 = vmatpush.msra.mxu0 0.0
    %76 = vmatpush.msra.mxu0 0.0
    %77 = vmatpush.msra.mxu0 0.0
    %78 = vmatpush.msra.mxu0 %v63
    %79 = vmatpush.msra.mxu0 %v52
    %80 = vmatpush.msra.mxu0 %v51
    %81 = vmatmul.f32.gmra.mxu0 %v56
    %v82 = vpop.f32.mrf.mxu0
    %v83 = vadd.f32 %v49, %v82
    %84 = vmatmul.f32.gmra.mxu0 %v59
    %v85 = vpop.f32.mrf.mxu0
    %v86 = vadd.f32 %v50, %v85
    %87 = vdwg.mxu0
    %v88 = vld [vmem:[%s2] sm:$0x1]
    %v89 = vld [vmem:[%s2 + $0x1] sm:$0x1]
    %v90 = vld [vmem:[%s2 + $0x2] sm:$0x1]
    %v91 = vld [vmem:[%s2 + $0x3] sm:$0x1]
    %v92 = vld [vmem:[%s2 + $0x4] sm:$0x1]
    %v93 = vld [vmem:[%s2 + $0x5] sm:$0x1]
    %v94 = vld [vmem:[%s2 + $0x6] sm:$0x1]
    %v95 = vld [vmem:[%s2 + $0x7] sm:$0x1]
    %v96 = vld [vmem:[%s4] sm:$0xff]
    %v97 = vld [vmem:[%s4 + $0x8] sm:$0xff]
    %v98 = vld [vmem:[%s4 + $0x10] sm:$0xff]
    %v99 = vld [vmem:[%s4 + $0x18] sm:$0xff]
    %v100 = vperm.slane %v88, 0
    %vm101 = vcmask 261120
    %v103 = vsel %vm101, %v83, 0
    %v106 = vsel %vm101, %v86, 0
    %108 = vmatpush.msra.mxu0 0.0
    %109 = vmatpush.msra.mxu0 0.0
    %110 = vmatpush.msra.mxu0 0.0
    %111 = vmatpush.msra.mxu0 0.0
    %112 = vmatpush.msra.mxu0 0.0
    %113 = vmatpush.msra.mxu0 0.0
    %114 = vmatpush.msra.mxu0 0.0
    %115 = vmatpush.msra.mxu0 0.0
    %116 = vmatpush.msra.mxu0 0.0
    %117 = vmatpush.msra.mxu0 0.0
    %118 = vmatpush.msra.mxu0 0.0
    %119 = vmatpush.msra.mxu0 0.0
    %120 = vmatpush.msra.mxu0 %v99
    %121 = vmatpush.msra.mxu0 %v98
    %122 = vmatpush.msra.mxu0 %v97
    %123 = vmatpush.msra.mxu0 %v96
    %124 = vmatmul.f32.gmra.mxu0 %v103
    %v125 = vpop.f32.mrf.mxu0
    %v126 = vadd.f32 %v100, %v125
    %127 = vmatmul.f32.gmra.mxu0 %v106
    %v128 = vpop.f32.mrf.mxu0
    %v129 = vadd.f32 %v100, %v128
    %130 = vdwg.mxu0
    %133 = vrot.lane.b32.xlu0 %v126, 96
    %v134 = vpop.permute.xlu0 %133
    %135 = vrot.lane.b32.xlu0 %v129, 96
    %v136 = vpop.permute.xlu0 %135
    %vm137 = vcmask 64512
    %v138 = vsel %vm137, %v126, 0
    %v140 = vsel %vm137, %v129, 0
    %v142 = vsel %vm137, %v134, 0
    %v144 = vsel %vm137, %v136, 0
    %146 = vmatpush.xpose.msra.mxu0 0.0
    %147 = vmatpush.xpose.msra.mxu0 0.0
    %148 = vmatpush.xpose.msra.mxu0 0.0
    %149 = vmatpush.xpose.msra.mxu0 0.0
    %150 = vmatpush.xpose.msra.mxu0 0.0
    %151 = vmatpush.xpose.msra.mxu0 0.0
    %152 = vmatpush.xpose.msra.mxu0 0.0
    %153 = vmatpush.xpose.msra.mxu0 0.0
    %154 = vmatpush.xpose.msra.mxu0 0.0
    %155 = vmatpush.xpose.msra.mxu0 0.0
    %156 = vmatpush.xpose.msra.mxu0 0.0
    %157 = vmatpush.xpose.msra.mxu0 0.0
    %158 = vmatpush.xpose.msra.mxu0 0.0
    %159 = vmatpush.xpose.msra.mxu0 0.0
    %160 = vmatpush.xpose.msra.mxu0 %v144
    %161 = vmatpush.xpose.msra.mxu0 %v142
    %162 = vmatmul.f32.gmra.mxu0 %v138
    %v163 = vpop.f32.mrf.mxu0
    %v164 = vadd.f32 0.0, %v163
    %165 = vmatmul.f32.gmra.mxu0 %v140
    %v166 = vpop.f32.mrf.mxu0
    %v167 = vadd.f32 0.0, %v166
    %168 = vdwg.mxu0
    %v169 = vmul.f32 %v164, 0.35355338
    %v170 = vmul.f32 %v167, 0.35355338
    %173 = vrot.lane.b32.xlu0 %v49, 96
    %v174 = vpop.permute.xlu0 %173
    %175 = vrot.lane.b32.xlu0 %v50, 96
    %v176 = vpop.permute.xlu0 %175
    %v179 = vadd.f32 %v169, %v174
    %v180 = vadd.f32 %v170, %v176
    %vm181 = vcmask 130048
    %v182 = vsel %vm181, %v179, -inf
    %183 = vmax.xlane.f32.xlu0 %v182
    %v184 = vpop.xlane.xlu0 %183
    %v185 = vsel %vm181, %v180, -inf
    %186 = vmax.xlane.f32.xlu0 %v185
    %v187 = vpop.xlane.xlu0 %186
    %v188 = vsub.f32 %v179, %v184
    %v189 = vsub.f32 %v180, %v187
    %v190 = vmul.f32 %v188, 1.442695
    %v191 = vpow.pop %v190
    %v192 = vmul.f32 %v189, 1.442695
    %v193 = vpow.pop %v192
    %v194 = vsel %vm181, %v191, 0.0
    %195 = vadd.xlane.f32.xlu0 %v194
    %v196 = vpop.xlane.xlu0 %195
    %v197 = vsel %vm181, %v193, 0.0
    %198 = vadd.xlane.f32.xlu0 %v197
    %v199 = vpop.xlane.xlu0 %198
    %v200 = vrcp.pop %v196
    %v201 = vrcp.pop %v199
    %v202 = vmul.f32 %v191, %v200
    %v203 = vmul.f32 %v193, %v201
    %204 = vrot.lane.b32.xlu0 %v126, 64
    %v205 = vpop.permute.xlu0 %204
    %206 = vrot.lane.b32.xlu0 %v129, 64
    %v207 = vpop.permute.xlu0 %206
    %v211 = vsel %vm181, %v202, 0
    %v214 = vsel %vm181, %v203, 0
    %216 = vmatpush.msra.mxu0 0.0
    %217 = vmatpush.msra.mxu0 0.0
    %218 = vmatpush.msra.mxu0 0.0
    %219 = vmatpush.msra.mxu0 0.0
    %220 = vmatpush.msra.mxu0 0.0
    %221 = vmatpush.msra.mxu0 0.0
    %222 = vmatpush.msra.mxu0 0.0
    %223 = vmatpush.msra.mxu0 0.0
    %224 = vmatpush.msra.mxu0 0.0
    %225 = vmatpush.msra.mxu0 0.0
    %226 = vmatpush.msra.mxu0 0.0
    %227 = vmatpush.msra.mxu0 0.0
    %228 = vmatpush.msra.mxu0 0.0
    %229 = vmatpush.msra.mxu0 0.0
    %230 = vmatpush.msra.mxu0 %v207
    %231 = vmatpush.msra.mxu0 %v205
    %232 = vmatmul.f32.gmra.mxu0 %v211
    %v233 = vpop.f32.mrf.mxu0
    %v234 = vadd.f32 0.0, %v233
    %235 = vmatmul.f32.gmra.mxu0 %v214
    %v236 = vpop.f32.mrf.mxu0
    %v237 = vadd.f32 0.0, %v236
    %238 = vdwg.mxu0
    %239 = vrot.lane.b32.xlu0 %v126, 120
    %v240 = vpop.permute.xlu0 %239
    %241 = vrot.lane.b32.xlu0 %v129, 120
    %v242 = vpop.permute.xlu0 %241
    %243 = vrot.lane.b32.xlu0 %v126, 88
    %v244 = vpop.permute.xlu0 %243
    %245 = vrot.lane.b32.xlu0 %v129, 88
    %v246 = vpop.permute.xlu0 %245
    %v247 = vsel %vm137, %v240, 0
    %v249 = vsel %vm137, %v242, 0
    %v251 = vsel %vm137, %v244, 0
    %v253 = vsel %vm137, %v246, 0
    %255 = vmatpush.xpose.msra.mxu0 0.0
    %256 = vmatpush.xpose.msra.mxu0 0.0
    %257 = vmatpush.xpose.msra.mxu0 0.0
    %258 = vmatpush.xpose.msra.mxu0 0.0
    %259 = vmatpush.xpose.msra.mxu0 0.0
    %260 = vmatpush.xpose.msra.mxu0 0.0
    %261 = vmatpush.xpose.msra.mxu0 0.0
    %262 = vmatpush.xpose.msra.mxu0 0.0
    %263 = vmatpush.xpose.msra.mxu0 0.0
    %264 = vmatpush.xpose.msra.mxu0 0.0
    %265 = vmatpush.xpose.msra.mxu0 0.0
    %266 = vmatpush.xpose.msra.mxu0 0.0
    %267 = vmatpush.xpose.msra.mxu0 0.0
    %268 = vmatpush.xpose.msra.mxu0 0.0
    %269 = vmatpush.xpose.msra.mxu0 %v253
    %270 = vmatpush.xpose.msra.mxu0 %v251
    %271 = vmatmul.f32.gmra.mxu0 %v247
    %v272 = vpop.f32.mrf.mxu0
    %v273 = vadd.f32 0.0, %v272
    %274 = vmatmul.f32.gmra.mxu0 %v249
    %v275 = vpop.f32.mrf.mxu0
    %v276 = vadd.f32 0.0, %v275
    %277 = vdwg.mxu0
    %v278 = vmul.f32 %v273, 0.35355338
    %v279 = vmul.f32 %v276, 0.35355338
    %v280 = vadd.f32 %v278, %v174
    %v281 = vadd.f32 %v279, %v176
    %v282 = vsel %vm181, %v280, -inf
    %283 = vmax.xlane.f32.xlu0 %v282
    %v284 = vpop.xlane.xlu0 %283
    %v285 = vsel %vm181, %v281, -inf
    %286 = vmax.xlane.f32.xlu0 %v285
    %v287 = vpop.xlane.xlu0 %286
    %v288 = vsub.f32 %v280, %v284
    %v289 = vsub.f32 %v281, %v287
    %v290 = vmul.f32 %v288, 1.442695
    %v291 = vpow.pop %v290
    %v292 = vmul.f32 %v289, 1.442695
    %v293 = vpow.pop %v292
    %v294 = vsel %vm181, %v291, 0.0
    %295 = vadd.xlane.f32.xlu0 %v294
    %v296 = vpop.xlane.xlu0 %295
    %v297 = vsel %vm181, %v293, 0.0
    %298 = vadd.xlane.f32.xlu0 %v297
    %v299 = vpop.xlane.xlu0 %298
    %v300 = vrcp.pop %v296
    %v301 = vrcp.pop %v299
    %v302 = vmul.f32 %v291, %v300
    %v303 = vmul.f32 %v293, %v301
    %304 = vrot.lane.b32.xlu0 %v126, 56
    %v305 = vpop.permute.xlu0 %304
    %306 = vrot.lane.b32.xlu0 %v129, 56
    %v307 = vpop.permute.xlu0 %306
    %v311 = vsel %vm181, %v302, 0
    %v314 = vsel %vm181, %v303, 0
    %316 = vmatpush.msra.mxu0 0.0
    %317 = vmatpush.msra.mxu0 0.0
    %318 = vmatpush.msra.mxu0 0.0
    %319 = vmatpush.msra.mxu0 0.0
    %320 = vmatpush.msra.mxu0 0.0
    %321 = vmatpush.msra.mxu0 0.0
    %322 = vmatpush.msra.mxu0 0.0
    %323 = vmatpush.msra.mxu0 0.0
    %324 = vmatpush.msra.mxu0 0.0
    %325 = vmatpush.msra.mxu0 0.0
    %326 = vmatpush.msra.mxu0 0.0
    %327 = vmatpush.msra.mxu0 0.0
    %328 = vmatpush.msra.mxu0 0.0
    %329 = vmatpush.msra.mxu0 0.0
    %330 = vmatpush.msra.mxu0 %v307
    %331 = vmatpush.msra.mxu0 %v305
    %332 = vmatmul.f32.gmra.mxu0 %v311
    %v333 = vpop.f32.mrf.mxu0
    %v334 = vadd.f32 0.0, %v333
    %335 = vmatmul.f32.gmra.mxu0 %v314
    %v336 = vpop.f32.mrf.mxu0
    %v337 = vadd.f32 0.0, %v336
    %338 = vdwg.mxu0
    %339 = vrot.lane.b32.xlu0 %v126, 112
    %v340 = vpop.permute.xlu0 %339
    %341 = vrot.lane.b32.xlu0 %v129, 112
    %v342 = vpop.permute.xlu0 %341
    %343 = vrot.lane.b32.xlu0 %v126, 80
    %v344 = vpop.permute.xlu0 %343
    %345 = vrot.lane.b32.xlu0 %v129, 80
    %v346 = vpop.permute.xlu0 %345
    %v347 = vsel %vm137, %v340, 0
    %v349 = vsel %vm137, %v342, 0
    %v351 = vsel %vm137, %v344, 0
    %v353 = vsel %vm137, %v346, 0
    %355 = vmatpush.xpose.msra.mxu0 0.0
    %356 = vmatpush.xpose.msra.mxu0 0.0
    %357 = vmatpush.xpose.msra.mxu0 0.0
    %358 = vmatpush.xpose.msra.mxu0 0.0
    %359 = vmatpush.xpose.msra.mxu0 0.0
    %360 = vmatpush.xpose.msra.mxu0 0.0
    %361 = vmatpush.xpose.msra.mxu0 0.0
    %362 = vmatpush.xpose.msra.mxu0 0.0
    %363 = vmatpush.xpose.msra.mxu0 0.0
    %364 = vmatpush.xpose.msra.mxu0 0.0
    %365 = vmatpush.xpose.msra.mxu0 0.0
    %366 = vmatpush.xpose.msra.mxu0 0.0
    %367 = vmatpush.xpose.msra.mxu0 0.0
    %368 = vmatpush.xpose.msra.mxu0 0.0
    %369 = vmatpush.xpose.msra.mxu0 %v353
    %370 = vmatpush.xpose.msra.mxu0 %v351
    %371 = vmatmul.f32.gmra.mxu0 %v347
    %v372 = vpop.f32.mrf.mxu0
    %v373 = vadd.f32 0.0, %v372
    %374 = vmatmul.f32.gmra.mxu0 %v349
    %v375 = vpop.f32.mrf.mxu0
    %v376 = vadd.f32 0.0, %v375
    %377 = vdwg.mxu0
    %v378 = vmul.f32 %v373, 0.35355338
    %v379 = vmul.f32 %v376, 0.35355338
    %v380 = vadd.f32 %v378, %v174
    %v381 = vadd.f32 %v379, %v176
    %v382 = vsel %vm181, %v380, -inf
    %383 = vmax.xlane.f32.xlu0 %v382
    %v384 = vpop.xlane.xlu0 %383
    %v385 = vsel %vm181, %v381, -inf
    %386 = vmax.xlane.f32.xlu0 %v385
    %v387 = vpop.xlane.xlu0 %386
    %v388 = vsub.f32 %v380, %v384
    %v389 = vsub.f32 %v381, %v387
    %v390 = vmul.f32 %v388, 1.442695
    %v391 = vpow.pop %v390
    %v392 = vmul.f32 %v389, 1.442695
    %v393 = vpow.pop %v392
    %v394 = vsel %vm181, %v391, 0.0
    %395 = vadd.xlane.f32.xlu0 %v394
    %v396 = vpop.xlane.xlu0 %395
    %v397 = vsel %vm181, %v393, 0.0
    %398 = vadd.xlane.f32.xlu0 %v397
    %v399 = vpop.xlane.xlu0 %398
    %v400 = vrcp.pop %v396
    %v401 = vrcp.pop %v399
    %v402 = vmul.f32 %v391, %v400
    %v403 = vmul.f32 %v393, %v401
    %404 = vrot.lane.b32.xlu0 %v126, 48
    %v405 = vpop.permute.xlu0 %404
    %406 = vrot.lane.b32.xlu0 %v129, 48
    %v407 = vpop.permute.xlu0 %406
    %v411 = vsel %vm181, %v402, 0
    %v414 = vsel %vm181, %v403, 0
    %416 = vmatpush.msra.mxu0 0.0
    %417 = vmatpush.msra.mxu0 0.0
    %418 = vmatpush.msra.mxu0 0.0
    %419 = vmatpush.msra.mxu0 0.0
    %420 = vmatpush.msra.mxu0 0.0
    %421 = vmatpush.msra.mxu0 0.0
    %422 = vmatpush.msra.mxu0 0.0
    %423 = vmatpush.msra.mxu0 0.0
    %424 = vmatpush.msra.mxu0 0.0
    %425 = vmatpush.msra.mxu0 0.0
    %426 = vmatpush.msra.mxu0 0.0
    %427 = vmatpush.msra.mxu0 0.0
    %428 = vmatpush.msra.mxu0 0.0
    %429 = vmatpush.msra.mxu0 0.0
    %430 = vmatpush.msra.mxu0 %v407
    %431 = vmatpush.msra.mxu0 %v405
    %432 = vmatmul.f32.gmra.mxu0 %v411
    %v433 = vpop.f32.mrf.mxu0
    %v434 = vadd.f32 0.0, %v433
    %435 = vmatmul.f32.gmra.mxu0 %v414
    %v436 = vpop.f32.mrf.mxu0
    %v437 = vadd.f32 0.0, %v436
    %438 = vdwg.mxu0
    %439 = vrot.lane.b32.xlu0 %v126, 104
    %v440 = vpop.permute.xlu0 %439
    %441 = vrot.lane.b32.xlu0 %v129, 104
    %v442 = vpop.permute.xlu0 %441
    %443 = vrot.lane.b32.xlu0 %v126, 72
    %v444 = vpop.permute.xlu0 %443
    %445 = vrot.lane.b32.xlu0 %v129, 72
    %v446 = vpop.permute.xlu0 %445
    %v447 = vsel %vm137, %v440, 0
    %v449 = vsel %vm137, %v442, 0
    %v451 = vsel %vm137, %v444, 0
    %v453 = vsel %vm137, %v446, 0
    %455 = vmatpush.xpose.msra.mxu0 0.0
    %456 = vmatpush.xpose.msra.mxu0 0.0
    %457 = vmatpush.xpose.msra.mxu0 0.0
    %458 = vmatpush.xpose.msra.mxu0 0.0
    %459 = vmatpush.xpose.msra.mxu0 0.0
    %460 = vmatpush.xpose.msra.mxu0 0.0
    %461 = vmatpush.xpose.msra.mxu0 0.0
    %462 = vmatpush.xpose.msra.mxu0 0.0
    %463 = vmatpush.xpose.msra.mxu0 0.0
    %464 = vmatpush.xpose.msra.mxu0 0.0
    %465 = vmatpush.xpose.msra.mxu0 0.0
    %466 = vmatpush.xpose.msra.mxu0 0.0
    %467 = vmatpush.xpose.msra.mxu0 0.0
    %468 = vmatpush.xpose.msra.mxu0 0.0
    %469 = vmatpush.xpose.msra.mxu0 %v453
    %470 = vmatpush.xpose.msra.mxu0 %v451
    %471 = vmatmul.f32.gmra.mxu0 %v447
    %v472 = vpop.f32.mrf.mxu0
    %v473 = vadd.f32 0.0, %v472
    %474 = vmatmul.f32.gmra.mxu0 %v449
    %v475 = vpop.f32.mrf.mxu0
    %v476 = vadd.f32 0.0, %v475
    %477 = vdwg.mxu0
    %v478 = vmul.f32 %v473, 0.35355338
    %v479 = vmul.f32 %v476, 0.35355338
    %v480 = vadd.f32 %v478, %v174
    %v481 = vadd.f32 %v479, %v176
    %v482 = vsel %vm181, %v480, -inf
    %483 = vmax.xlane.f32.xlu0 %v482
    %v484 = vpop.xlane.xlu0 %483
    %v485 = vsel %vm181, %v481, -inf
    %486 = vmax.xlane.f32.xlu0 %v485
    %v487 = vpop.xlane.xlu0 %486
    %v488 = vsub.f32 %v480, %v484
    %v489 = vsub.f32 %v481, %v487
    %v490 = vmul.f32 %v488, 1.442695
    %v491 = vpow.pop %v490
    %v492 = vmul.f32 %v489, 1.442695
    %v493 = vpow.pop %v492
    %v494 = vsel %vm181, %v491, 0.0
    %495 = vadd.xlane.f32.xlu0 %v494
    %v496 = vpop.xlane.xlu0 %495
    %v497 = vsel %vm181, %v493, 0.0
    %498 = vadd.xlane.f32.xlu0 %v497
    %v499 = vpop.xlane.xlu0 %498
    %v500 = vrcp.pop %v496
    %v501 = vrcp.pop %v499
    %v502 = vmul.f32 %v491, %v500
    %v503 = vmul.f32 %v493, %v501
    %504 = vrot.lane.b32.xlu0 %v126, 40
    %v505 = vpop.permute.xlu0 %504
    %506 = vrot.lane.b32.xlu0 %v129, 40
    %v507 = vpop.permute.xlu0 %506
    %v511 = vsel %vm181, %v502, 0
    %v514 = vsel %vm181, %v503, 0
    %516 = vmatpush.msra.mxu0 0.0
    %517 = vmatpush.msra.mxu0 0.0
    %518 = vmatpush.msra.mxu0 0.0
    %519 = vmatpush.msra.mxu0 0.0
    %520 = vmatpush.msra.mxu0 0.0
    %521 = vmatpush.msra.mxu0 0.0
    %522 = vmatpush.msra.mxu0 0.0
    %523 = vmatpush.msra.mxu0 0.0
    %524 = vmatpush.msra.mxu0 0.0
    %525 = vmatpush.msra.mxu0 0.0
    %526 = vmatpush.msra.mxu0 0.0
    %527 = vmatpush.msra.mxu0 0.0
    %528 = vmatpush.msra.mxu0 0.0
    %529 = vmatpush.msra.mxu0 0.0
    %530 = vmatpush.msra.mxu0 %v507
    %531 = vmatpush.msra.mxu0 %v505
    %532 = vmatmul.f32.gmra.mxu0 %v511
    %v533 = vpop.f32.mrf.mxu0
    %v534 = vadd.f32 0.0, %v533
    %535 = vmatmul.f32.gmra.mxu0 %v514
    %v536 = vpop.f32.mrf.mxu0
    %v537 = vadd.f32 0.0, %v536
    %538 = vdwg.mxu0
    %541 = vrot.lane.b32.xlu0 %v334, 8
    %v542 = vpop.permute.xlu0 %541
    %543 = vrot.lane.b32.xlu0 %v337, 8
    %v544 = vpop.permute.xlu0 %543
    %549 = vrot.lane.b32.xlu0 %v434, 16
    %v550 = vpop.permute.xlu0 %549
    %551 = vrot.lane.b32.xlu0 %v437, 16
    %v552 = vpop.permute.xlu0 %551
    %557 = vrot.lane.b32.xlu0 %v534, 24
    %v558 = vpop.permute.xlu0 %557
    %559 = vrot.lane.b32.xlu0 %v537, 24
    %v560 = vpop.permute.xlu0 %559
    %v563 = vsel %vm137, %v234, %v542
    %v564 = vsel %vm137, %v237, %v544
    %v565 = vsel %vm181, %v563, %v550
    %v566 = vsel %vm181, %v564, %v552
    %vm567 = vcmask 195584
    %v568 = vsel %vm567, %v565, %v558
    %v569 = vsel %vm567, %v566, %v560
    %v570 = vld [vmem:[%s5] sm:$0xff]
    %v571 = vld [vmem:[%s5 + $0x8] sm:$0xff]
    %v572 = vld [vmem:[%s5 + $0x10] sm:$0xff]
    %v573 = vld [vmem:[%s5 + $0x18] sm:$0xff]
    %v574 = vperm.slane %v89, 0
    %v576 = vsel %vm101, %v568, 0
    %v579 = vsel %vm101, %v569, 0
    %581 = vmatpush.msra.mxu0 0.0
    %582 = vmatpush.msra.mxu0 0.0
    %583 = vmatpush.msra.mxu0 0.0
    %584 = vmatpush.msra.mxu0 0.0
    %585 = vmatpush.msra.mxu0 0.0
    %586 = vmatpush.msra.mxu0 0.0
    %587 = vmatpush.msra.mxu0 0.0
    %588 = vmatpush.msra.mxu0 0.0
    %589 = vmatpush.msra.mxu0 0.0
    %590 = vmatpush.msra.mxu0 0.0
    %591 = vmatpush.msra.mxu0 0.0
    %592 = vmatpush.msra.mxu0 0.0
    %593 = vmatpush.msra.mxu0 %v573
    %594 = vmatpush.msra.mxu0 %v572
    %595 = vmatpush.msra.mxu0 %v571
    %596 = vmatpush.msra.mxu0 %v570
    %597 = vmatmul.f32.gmra.mxu0 %v576
    %v598 = vpop.f32.mrf.mxu0
    %v599 = vadd.f32 %v574, %v598
    %600 = vmatmul.f32.gmra.mxu0 %v579
    %v601 = vpop.f32.mrf.mxu0
    %v602 = vadd.f32 %v574, %v601
    %603 = vdwg.mxu0
    %v604 = vadd.f32 %v83, %v599
    %v605 = vadd.f32 %v86, %v602
    %v606 = vsel %vm101, %v604, 0.0
    %607 = vadd.xlane.f32.xlu0 %v606
    %v608 = vpop.xlane.xlu0 %607
    %v609 = vsel %vm101, %v605, 0.0
    %610 = vadd.xlane.f32.xlu0 %v609
    %v611 = vpop.xlane.xlu0 %610
    %v612 = vrcp.pop 32.0
    %v613 = vmul.f32 32.0, %v612
    %v614 = vsub.f32 1.0, %v613
    %v615 = vmul.f32 %v612, %v614
    %v616 = vadd.f32 %v612, %v615
    %vm617 = vweird.f32 %v612
    %v618 = vsel %vm617, %v612, %v616
    %v619 = vmul.f32 %v608, %v618
    %v620 = vmul.f32 %v611, %v618
    %v621 = vmul.f32 %v604, %v604
    %v622 = vmul.f32 %v605, %v605
    %v623 = vsel %vm101, %v621, 0.0
    %624 = vadd.xlane.f32.xlu0 %v623
    %v625 = vpop.xlane.xlu0 %624
    %v626 = vsel %vm101, %v622, 0.0
    %627 = vadd.xlane.f32.xlu0 %v626
    %v628 = vpop.xlane.xlu0 %627
    %v629 = vmul.f32 %v625, %v618
    %v630 = vmul.f32 %v628, %v618
    %v631 = vmul.f32 %v619, %v619
    %v632 = vmul.f32 %v620, %v620
    %v633 = vsub.f32 %v629, %v631
    %v634 = vsub.f32 %v630, %v632
    %v635 = vsub.f32 %v604, %v619
    %v636 = vsub.f32 %v605, %v620
    %v637 = vadd.f32 %v633, 1e-05
    %v638 = vadd.f32 %v634, 1e-05
    %v639 = vrsqrt.pop %v637
    %v640 = vmul.f32 %v639, %v637
    %v641 = vmul.f32 %v640, %v639
    %v642 = vmul.f32 0.5, %v641
    %v643 = vsub.f32 1.5, %v642
    %v644 = vmul.f32 %v639, %v643
    %vm645 = vweird.f32 %v637
    %vm646 = vweird.f32 %v639
    %vm647 = vmor %vm645, %vm646
    %v648 = vsel %vm647, %v639, %v644
    %v649 = vrsqrt.pop %v638
    %v650 = vmul.f32 %v649, %v638
    %v651 = vmul.f32 %v650, %v649
    %v652 = vmul.f32 0.5, %v651
    %v653 = vsub.f32 1.5, %v652
    %v654 = vmul.f32 %v649, %v653
    %vm655 = vweird.f32 %v638
    %vm656 = vweird.f32 %v649
    %vm657 = vmor %vm655, %vm656
    %v658 = vsel %vm657, %v649, %v654
    %v659 = vmul.f32 %v635, %v648
    %v660 = vmul.f32 %v636, %v658
    %v661 = vperm.slane %v90, 0
    %v662 = vmul.f32 %v659, %v661
    %v663 = vmul.f32 %v660, %v661
    %v664 = vperm.slane %v91, 0
    %v665 = vadd.f32 %v662, %v664
    %v666 = vadd.f32 %v663, %v664
    %v667 = vld [vmem:[%s6] sm:$0xff]
    %v668 = vld [vmem:[%s6 + $0x8] sm:$0xff]
    %v669 = vld [vmem:[%s6 + $0x10] sm:$0xff]
    %v670 = vld [vmem:[%s6 + $0x18] sm:$0xff]
    %v671 = vperm.slane %v92, 0
    %v673 = vsel %vm101, %v665, 0
    %v676 = vsel %vm101, %v666, 0
    %678 = vmatpush.msra.mxu0 0.0
    %679 = vmatpush.msra.mxu0 0.0
    %680 = vmatpush.msra.mxu0 0.0
    %681 = vmatpush.msra.mxu0 0.0
    %682 = vmatpush.msra.mxu0 0.0
    %683 = vmatpush.msra.mxu0 0.0
    %684 = vmatpush.msra.mxu0 0.0
    %685 = vmatpush.msra.mxu0 0.0
    %686 = vmatpush.msra.mxu0 0.0
    %687 = vmatpush.msra.mxu0 0.0
    %688 = vmatpush.msra.mxu0 0.0
    %689 = vmatpush.msra.mxu0 0.0
    %690 = vmatpush.msra.mxu0 %v670
    %691 = vmatpush.msra.mxu0 %v669
    %692 = vmatpush.msra.mxu0 %v668
    %693 = vmatpush.msra.mxu0 %v667
    %694 = vmatmul.f32.gmra.mxu0 %v673
    %v695 = vpop.f32.mrf.mxu0
    %v696 = vadd.f32 %v671, %v695
    %697 = vmatmul.f32.gmra.mxu0 %v676
    %v698 = vpop.f32.mrf.mxu0
    %v699 = vadd.f32 %v671, %v698
    %700 = vdwg.mxu0
    %v701 = vmax.f32 %v696, 0.0
    %v702 = vmax.f32 %v699, 0.0
    %v703 = vld [vmem:[%s7] sm:$0xff]
    %v704 = vld [vmem:[%s7 + $0x8] sm:$0xff]
    %v705 = vld [vmem:[%s7 + $0x10] sm:$0xff]
    %v706 = vld [vmem:[%s7 + $0x18] sm:$0xff]
    %v707 = vld [vmem:[%s7 + $0x20] sm:$0xff]
    %v708 = vld [vmem:[%s7 + $0x28] sm:$0xff]
    %v709 = vld [vmem:[%s7 + $0x30] sm:$0xff]
    %v710 = vld [vmem:[%s7 + $0x38] sm:$0xff]
    %v711 = vperm.slane %v93, 0
    %vm712 = vcmask 523264
    %v714 = vsel %vm712, %v701, 0
    %v717 = vsel %vm712, %v702, 0
    %719 = vmatpush.msra.mxu0 0.0
    %720 = vmatpush.msra.mxu0 0.0
    %721 = vmatpush.msra.mxu0 0.0
    %722 = vmatpush.msra.mxu0 0.0
    %723 = vmatpush.msra.mxu0 0.0
    %724 = vmatpush.msra.mxu0 0.0
    %725 = vmatpush.msra.mxu0 0.0
    %726 = vmatpush.msra.mxu0 0.0
    %727 = vmatpush.msra.mxu0 %v710
    %728 = vmatpush.msra.mxu0 %v709
    %729 = vmatpush.msra.mxu0 %v708
    %730 = vmatpush.msra.mxu0 %v707
    %731 = vmatpush.msra.mxu0 %v706
    %732 = vmatpush.msra.mxu0 %v705
    %733 = vmatpush.msra.mxu0 %v704
    %734 = vmatpush.msra.mxu0 %v703
    %735 = vmatmul.f32.gmra.mxu0 %v714
    %v736 = vpop.f32.mrf.mxu0
    %v737 = vadd.f32 %v711, %v736
    %738 = vmatmul.f32.gmra.mxu0 %v717
    %v739 = vpop.f32.mrf.mxu0
    %v740 = vadd.f32 %v711, %v739
    %741 = vdwg.mxu0
    %v742 = vadd.f32 %v665, %v737
    %v743 = vadd.f32 %v666, %v740
    %v744 = vsel %vm101, %v742, 0.0
    %745 = vadd.xlane.f32.xlu0 %v744
    %v746 = vpop.xlane.xlu0 %745
    %v747 = vsel %vm101, %v743, 0.0
    %748 = vadd.xlane.f32.xlu0 %v747
    %v749 = vpop.xlane.xlu0 %748
    %v750 = vmul.f32 %v746, %v618
    %v751 = vmul.f32 %v749, %v618
    %v752 = vmul.f32 %v742, %v742
    %v753 = vmul.f32 %v743, %v743
    %v754 = vsel %vm101, %v752, 0.0
    %755 = vadd.xlane.f32.xlu0 %v754
    %v756 = vpop.xlane.xlu0 %755
    %v757 = vsel %vm101, %v753, 0.0
    %758 = vadd.xlane.f32.xlu0 %v757
    %v759 = vpop.xlane.xlu0 %758
    %v760 = vmul.f32 %v756, %v618
    %v761 = vmul.f32 %v759, %v618
    %v762 = vmul.f32 %v750, %v750
    %v763 = vmul.f32 %v751, %v751
    %v764 = vsub.f32 %v760, %v762
    %v765 = vsub.f32 %v761, %v763
    %v766 = vsub.f32 %v742, %v750
    %v767 = vsub.f32 %v743, %v751
    %v768 = vadd.f32 %v764, 1e-05
    %v769 = vadd.f32 %v765, 1e-05
    %v770 = vrsqrt.pop %v768
    %v771 = vmul.f32 %v770, %v768
    %v772 = vmul.f32 %v771, %v770
    %v773 = vmul.f32 0.5, %v772
    %v774 = vsub.f32 1.5, %v773
    %v775 = vmul.f32 %v770, %v774
    %vm776 = vweird.f32 %v768
    %vm777 = vweird.f32 %v770
    %vm778 = vmor %vm776, %vm777
    %v779 = vsel %vm778, %v770, %v775
    %v780 = vrsqrt.pop %v769
    %v781 = vmul.f32 %v780, %v769
    %v782 = vmul.f32 %v781, %v780
    %v783 = vmul.f32 0.5, %v782
    %v784 = vsub.f32 1.5, %v783
    %v785 = vmul.f32 %v780, %v784
    %vm786 = vweird.f32 %v769
    %vm787 = vweird.f32 %v780
    %vm788 = vmor %vm786, %vm787
    %v789 = vsel %vm788, %v780, %v785
    %v790 = vmul.f32 %v766, %v779
    %v791 = vmul.f32 %v767, %v789
    %v792 = vperm.slane %v94, 0
    %v793 = vmul.f32 %v790, %v792
    %v794 = vmul.f32 %v791, %v792
    %v795 = vperm.slane %v95, 0
    %v796 = vadd.f32 %v793, %v795
    %v797 = vadd.f32 %v794, %v795
    %v798 = vld [vmem:[%s2 + $0x8] sm:$0x1]
    %v799 = vld [vmem:[%s2 + $0x9] sm:$0x1]
    %v800 = vld [vmem:[%s2 + $0xa] sm:$0x1]
    %v801 = vld [vmem:[%s2 + $0xb] sm:$0x1]
    %v802 = vld [vmem:[%s2 + $0xc] sm:$0x1]
    %v803 = vld [vmem:[%s2 + $0xd] sm:$0x1]
    %v804 = vld [vmem:[%s2 + $0xe] sm:$0x1]
    %v805 = vld [vmem:[%s2 + $0xf] sm:$0x1]
    %s806 = scalar_lea.vmem %s4, 32
    %v807 = vld [vmem:[%s806] sm:$0xff]
    %v808 = vld [vmem:[%s806 + $0x8] sm:$0xff]
    %v809 = vld [vmem:[%s806 + $0x10] sm:$0xff]
    %v810 = vld [vmem:[%s806 + $0x18] sm:$0xff]
    %v811 = vperm.slane %v798, 0
    %v813 = vsel %vm101, %v796, 0
    %v816 = vsel %vm101, %v797, 0
    %818 = vmatpush.msra.mxu0 0.0
    %819 = vmatpush.msra.mxu0 0.0
    %820 = vmatpush.msra.mxu0 0.0
    %821 = vmatpush.msra.mxu0 0.0
    %822 = vmatpush.msra.mxu0 0.0
    %823 = vmatpush.msra.mxu0 0.0
    %824 = vmatpush.msra.mxu0 0.0
    %825 = vmatpush.msra.mxu0 0.0
    %826 = vmatpush.msra.mxu0 0.0
    %827 = vmatpush.msra.mxu0 0.0
    %828 = vmatpush.msra.mxu0 0.0
    %829 = vmatpush.msra.mxu0 0.0
    %830 = vmatpush.msra.mxu0 %v810
    %831 = vmatpush.msra.mxu0 %v809
    %832 = vmatpush.msra.mxu0 %v808
    %833 = vmatpush.msra.mxu0 %v807
    %834 = vmatmul.f32.gmra.mxu0 %v813
    %v835 = vpop.f32.mrf.mxu0
    %v836 = vadd.f32 %v811, %v835
    %837 = vmatmul.f32.gmra.mxu0 %v816
    %v838 = vpop.f32.mrf.mxu0
    %v839 = vadd.f32 %v811, %v838
    %840 = vdwg.mxu0
    %843 = vrot.lane.b32.xlu0 %v836, 96
    %v844 = vpop.permute.xlu0 %843
    %845 = vrot.lane.b32.xlu0 %v839, 96
    %v846 = vpop.permute.xlu0 %845
    %v847 = vsel %vm137, %v836, 0
    %v849 = vsel %vm137, %v839, 0
    %v851 = vsel %vm137, %v844, 0
    %v853 = vsel %vm137, %v846, 0
    %855 = vmatpush.xpose.msra.mxu0 0.0
    %856 = vmatpush.xpose.msra.mxu0 0.0
    %857 = vmatpush.xpose.msra.mxu0 0.0
    %858 = vmatpush.xpose.msra.mxu0 0.0
    %859 = vmatpush.xpose.msra.mxu0 0.0
    %860 = vmatpush.xpose.msra.mxu0 0.0
    %861 = vmatpush.xpose.msra.mxu0 0.0
    %862 = vmatpush.xpose.msra.mxu0 0.0
    %863 = vmatpush.xpose.msra.mxu0 0.0
    %864 = vmatpush.xpose.msra.mxu0 0.0
    %865 = vmatpush.xpose.msra.mxu0 0.0
    %866 = vmatpush.xpose.msra.mxu0 0.0
    %867 = vmatpush.xpose.msra.mxu0 0.0
    %868 = vmatpush.xpose.msra.mxu0 0.0
    %869 = vmatpush.xpose.msra.mxu0 %v853
    %870 = vmatpush.xpose.msra.mxu0 %v851
    %871 = vmatmul.f32.gmra.mxu0 %v847
    %v872 = vpop.f32.mrf.mxu0
    %v873 = vadd.f32 0.0, %v872
    %874 = vmatmul.f32.gmra.mxu0 %v849
    %v875 = vpop.f32.mrf.mxu0
    %v876 = vadd.f32 0.0, %v875
    %877 = vdwg.mxu0
    %v878 = vmul.f32 %v873, 0.35355338
    %v879 = vmul.f32 %v876, 0.35355338
    %v880 = vadd.f32 %v878, %v174
    %v881 = vadd.f32 %v879, %v176
    %v882 = vsel %vm181, %v880, -inf
    %883 = vmax.xlane.f32.xlu0 %v882
    %v884 = vpop.xlane.xlu0 %883
    %v885 = vsel %vm181, %v881, -inf
    %886 = vmax.xlane.f32.xlu0 %v885
    %v887 = vpop.xlane.xlu0 %886
    %v888 = vsub.f32 %v880, %v884
    %v889 = vsub.f32 %v881, %v887
    %v890 = vmul.f32 %v888, 1.442695
    %v891 = vpow.pop %v890
    %v892 = vmul.f32 %v889, 1.442695
    %v893 = vpow.pop %v892
    %v894 = vsel %vm181, %v891, 0.0
    %895 = vadd.xlane.f32.xlu0 %v894
    %v896 = vpop.xlane.xlu0 %895
    %v897 = vsel %vm181, %v893, 0.0
    %898 = vadd.xlane.f32.xlu0 %v897
    %v899 = vpop.xlane.xlu0 %898
    %v900 = vrcp.pop %v896
    %v901 = vrcp.pop %v899
    %v902 = vmul.f32 %v891, %v900
    %v903 = vmul.f32 %v893, %v901
    %904 = vrot.lane.b32.xlu0 %v836, 64
    %v905 = vpop.permute.xlu0 %904
    %906 = vrot.lane.b32.xlu0 %v839, 64
    %v907 = vpop.permute.xlu0 %906
    %v911 = vsel %vm181, %v902, 0
    %v914 = vsel %vm181, %v903, 0
    %916 = vmatpush.msra.mxu0 0.0
    %917 = vmatpush.msra.mxu0 0.0
    %918 = vmatpush.msra.mxu0 0.0
    %919 = vmatpush.msra.mxu0 0.0
    %920 = vmatpush.msra.mxu0 0.0
    %921 = vmatpush.msra.mxu0 0.0
    %922 = vmatpush.msra.mxu0 0.0
    %923 = vmatpush.msra.mxu0 0.0
    %924 = vmatpush.msra.mxu0 0.0
    %925 = vmatpush.msra.mxu0 0.0
    %926 = vmatpush.msra.mxu0 0.0
    %927 = vmatpush.msra.mxu0 0.0
    %928 = vmatpush.msra.mxu0 0.0
    %929 = vmatpush.msra.mxu0 0.0
    %930 = vmatpush.msra.mxu0 %v907
    %931 = vmatpush.msra.mxu0 %v905
    %932 = vmatmul.f32.gmra.mxu0 %v911
    %v933 = vpop.f32.mrf.mxu0
    %v934 = vadd.f32 0.0, %v933
    %935 = vmatmul.f32.gmra.mxu0 %v914
    %v936 = vpop.f32.mrf.mxu0
    %v937 = vadd.f32 0.0, %v936
    %938 = vdwg.mxu0
    %939 = vrot.lane.b32.xlu0 %v836, 120
    %v940 = vpop.permute.xlu0 %939
    %941 = vrot.lane.b32.xlu0 %v839, 120
    %v942 = vpop.permute.xlu0 %941
    %943 = vrot.lane.b32.xlu0 %v836, 88
    %v944 = vpop.permute.xlu0 %943
    %945 = vrot.lane.b32.xlu0 %v839, 88
    %v946 = vpop.permute.xlu0 %945
    %v947 = vsel %vm137, %v940, 0
    %v949 = vsel %vm137, %v942, 0
    %v951 = vsel %vm137, %v944, 0
    %v953 = vsel %vm137, %v946, 0
    %955 = vmatpush.xpose.msra.mxu0 0.0
    %956 = vmatpush.xpose.msra.mxu0 0.0
    %957 = vmatpush.xpose.msra.mxu0 0.0
    %958 = vmatpush.xpose.msra.mxu0 0.0
    %959 = vmatpush.xpose.msra.mxu0 0.0
    %960 = vmatpush.xpose.msra.mxu0 0.0
    %961 = vmatpush.xpose.msra.mxu0 0.0
    %962 = vmatpush.xpose.msra.mxu0 0.0
    %963 = vmatpush.xpose.msra.mxu0 0.0
    %964 = vmatpush.xpose.msra.mxu0 0.0
    %965 = vmatpush.xpose.msra.mxu0 0.0
    %966 = vmatpush.xpose.msra.mxu0 0.0
    %967 = vmatpush.xpose.msra.mxu0 0.0
    %968 = vmatpush.xpose.msra.mxu0 0.0
    %969 = vmatpush.xpose.msra.mxu0 %v953
    %970 = vmatpush.xpose.msra.mxu0 %v951
    %971 = vmatmul.f32.gmra.mxu0 %v947
    %v972 = vpop.f32.mrf.mxu0
    %v973 = vadd.f32 0.0, %v972
    %974 = vmatmul.f32.gmra.mxu0 %v949
    %v975 = vpop.f32.mrf.mxu0
    %v976 = vadd.f32 0.0, %v975
    %977 = vdwg.mxu0
    %v978 = vmul.f32 %v973, 0.35355338
    %v979 = vmul.f32 %v976, 0.35355338
    %v980 = vadd.f32 %v978, %v174
    %v981 = vadd.f32 %v979, %v176
    %v982 = vsel %vm181, %v980, -inf
    %983 = vmax.xlane.f32.xlu0 %v982
    %v984 = vpop.xlane.xlu0 %983
    %v985 = vsel %vm181, %v981, -inf
    %986 = vmax.xlane.f32.xlu0 %v985
    %v987 = vpop.xlane.xlu0 %986
    %v988 = vsub.f32 %v980, %v984
    %v989 = vsub.f32 %v981, %v987
    %v990 = vmul.f32 %v988, 1.442695
    %v991 = vpow.pop %v990
    %v992 = vmul.f32 %v989, 1.442695
    %v993 = vpow.pop %v992
    %v994 = vsel %vm181, %v991, 0.0
    %995 = vadd.xlane.f32.xlu0 %v994
    %v996 = vpop.xlane.xlu0 %995
    %v997 = vsel %vm181, %v993, 0.0
    %998 = vadd.xlane.f32.xlu0 %v997
    %v999 = vpop.xlane.xlu0 %998
    %v1000 = vrcp.pop %v996
    %v1001 = vrcp.pop %v999
    %v1002 = vmul.f32 %v991, %v1000
    %v1003 = vmul.f32 %v993, %v1001
    %1004 = vrot.lane.b32.xlu0 %v836, 56
    %v1005 = vpop.permute.xlu0 %1004
    %1006 = vrot.lane.b32.xlu0 %v839, 56
    %v1007 = vpop.permute.xlu0 %1006
    %v1011 = vsel %vm181, %v1002, 0
    %v1014 = vsel %vm181, %v1003, 0
    %1016 = vmatpush.msra.mxu0 0.0
    %1017 = vmatpush.msra.mxu0 0.0
    %1018 = vmatpush.msra.mxu0 0.0
    %1019 = vmatpush.msra.mxu0 0.0
    %1020 = vmatpush.msra.mxu0 0.0
    %1021 = vmatpush.msra.mxu0 0.0
    %1022 = vmatpush.msra.mxu0 0.0
    %1023 = vmatpush.msra.mxu0 0.0
    %1024 = vmatpush.msra.mxu0 0.0
    %1025 = vmatpush.msra.mxu0 0.0
    %1026 = vmatpush.msra.mxu0 0.0
    %1027 = vmatpush.msra.mxu0 0.0
    %1028 = vmatpush.msra.mxu0 0.0
    %1029 = vmatpush.msra.mxu0 0.0
    %1030 = vmatpush.msra.mxu0 %v1007
    %1031 = vmatpush.msra.mxu0 %v1005
    %1032 = vmatmul.f32.gmra.mxu0 %v1011
    %v1033 = vpop.f32.mrf.mxu0
    %v1034 = vadd.f32 0.0, %v1033
    %1035 = vmatmul.f32.gmra.mxu0 %v1014
    %v1036 = vpop.f32.mrf.mxu0
    %v1037 = vadd.f32 0.0, %v1036
    %1038 = vdwg.mxu0
    %1039 = vrot.lane.b32.xlu0 %v836, 112
    %v1040 = vpop.permute.xlu0 %1039
    %1041 = vrot.lane.b32.xlu0 %v839, 112
    %v1042 = vpop.permute.xlu0 %1041
    %1043 = vrot.lane.b32.xlu0 %v836, 80
    %v1044 = vpop.permute.xlu0 %1043
    %1045 = vrot.lane.b32.xlu0 %v839, 80
    %v1046 = vpop.permute.xlu0 %1045
    %v1047 = vsel %vm137, %v1040, 0
    %v1049 = vsel %vm137, %v1042, 0
    %v1051 = vsel %vm137, %v1044, 0
    %v1053 = vsel %vm137, %v1046, 0
    %1055 = vmatpush.xpose.msra.mxu0 0.0
    %1056 = vmatpush.xpose.msra.mxu0 0.0
    %1057 = vmatpush.xpose.msra.mxu0 0.0
    %1058 = vmatpush.xpose.msra.mxu0 0.0
    %1059 = vmatpush.xpose.msra.mxu0 0.0
    %1060 = vmatpush.xpose.msra.mxu0 0.0
    %1061 = vmatpush.xpose.msra.mxu0 0.0
    %1062 = vmatpush.xpose.msra.mxu0 0.0
    %1063 = vmatpush.xpose.msra.mxu0 0.0
    %1064 = vmatpush.xpose.msra.mxu0 0.0
    %1065 = vmatpush.xpose.msra.mxu0 0.0
    %1066 = vmatpush.xpose.msra.mxu0 0.0
    %1067 = vmatpush.xpose.msra.mxu0 0.0
    %1068 = vmatpush.xpose.msra.mxu0 0.0
    %1069 = vmatpush.xpose.msra.mxu0 %v1053
    %1070 = vmatpush.xpose.msra.mxu0 %v1051
    %1071 = vmatmul.f32.gmra.mxu0 %v1047
    %v1072 = vpop.f32.mrf.mxu0
    %v1073 = vadd.f32 0.0, %v1072
    %1074 = vmatmul.f32.gmra.mxu0 %v1049
    %v1075 = vpop.f32.mrf.mxu0
    %v1076 = vadd.f32 0.0, %v1075
    %1077 = vdwg.mxu0
    %v1078 = vmul.f32 %v1073, 0.35355338
    %v1079 = vmul.f32 %v1076, 0.35355338
    %v1080 = vadd.f32 %v1078, %v174
    %v1081 = vadd.f32 %v1079, %v176
    %v1082 = vsel %vm181, %v1080, -inf
    %1083 = vmax.xlane.f32.xlu0 %v1082
    %v1084 = vpop.xlane.xlu0 %1083
    %v1085 = vsel %vm181, %v1081, -inf
    %1086 = vmax.xlane.f32.xlu0 %v1085
    %v1087 = vpop.xlane.xlu0 %1086
    %v1088 = vsub.f32 %v1080, %v1084
    %v1089 = vsub.f32 %v1081, %v1087
    %v1090 = vmul.f32 %v1088, 1.442695
    %v1091 = vpow.pop %v1090
    %v1092 = vmul.f32 %v1089, 1.442695
    %v1093 = vpow.pop %v1092
    %v1094 = vsel %vm181, %v1091, 0.0
    %1095 = vadd.xlane.f32.xlu0 %v1094
    %v1096 = vpop.xlane.xlu0 %1095
    %v1097 = vsel %vm181, %v1093, 0.0
    %1098 = vadd.xlane.f32.xlu0 %v1097
    %v1099 = vpop.xlane.xlu0 %1098
    %v1100 = vrcp.pop %v1096
    %v1101 = vrcp.pop %v1099
    %v1102 = vmul.f32 %v1091, %v1100
    %v1103 = vmul.f32 %v1093, %v1101
    %1104 = vrot.lane.b32.xlu0 %v836, 48
    %v1105 = vpop.permute.xlu0 %1104
    %1106 = vrot.lane.b32.xlu0 %v839, 48
    %v1107 = vpop.permute.xlu0 %1106
    %v1111 = vsel %vm181, %v1102, 0
    %v1114 = vsel %vm181, %v1103, 0
    %1116 = vmatpush.msra.mxu0 0.0
    %1117 = vmatpush.msra.mxu0 0.0
    %1118 = vmatpush.msra.mxu0 0.0
    %1119 = vmatpush.msra.mxu0 0.0
    %1120 = vmatpush.msra.mxu0 0.0
    %1121 = vmatpush.msra.mxu0 0.0
    %1122 = vmatpush.msra.mxu0 0.0
    %1123 = vmatpush.msra.mxu0 0.0
    %1124 = vmatpush.msra.mxu0 0.0
    %1125 = vmatpush.msra.mxu0 0.0
    %1126 = vmatpush.msra.mxu0 0.0
    %1127 = vmatpush.msra.mxu0 0.0
    %1128 = vmatpush.msra.mxu0 0.0
    %1129 = vmatpush.msra.mxu0 0.0
    %1130 = vmatpush.msra.mxu0 %v1107
    %1131 = vmatpush.msra.mxu0 %v1105
    %1132 = vmatmul.f32.gmra.mxu0 %v1111
    %v1133 = vpop.f32.mrf.mxu0
    %v1134 = vadd.f32 0.0, %v1133
    %1135 = vmatmul.f32.gmra.mxu0 %v1114
    %v1136 = vpop.f32.mrf.mxu0
    %v1137 = vadd.f32 0.0, %v1136
    %1138 = vdwg.mxu0
    %1139 = vrot.lane.b32.xlu0 %v836, 104
    %v1140 = vpop.permute.xlu0 %1139
    %1141 = vrot.lane.b32.xlu0 %v839, 104
    %v1142 = vpop.permute.xlu0 %1141
    %1143 = vrot.lane.b32.xlu0 %v836, 72
    %v1144 = vpop.permute.xlu0 %1143
    %1145 = vrot.lane.b32.xlu0 %v839, 72
    %v1146 = vpop.permute.xlu0 %1145
    %v1147 = vsel %vm137, %v1140, 0
    %v1149 = vsel %vm137, %v1142, 0
    %v1151 = vsel %vm137, %v1144, 0
    %v1153 = vsel %vm137, %v1146, 0
    %1155 = vmatpush.xpose.msra.mxu0 0.0
    %1156 = vmatpush.xpose.msra.mxu0 0.0
    %1157 = vmatpush.xpose.msra.mxu0 0.0
    %1158 = vmatpush.xpose.msra.mxu0 0.0
    %1159 = vmatpush.xpose.msra.mxu0 0.0
    %1160 = vmatpush.xpose.msra.mxu0 0.0
    %1161 = vmatpush.xpose.msra.mxu0 0.0
    %1162 = vmatpush.xpose.msra.mxu0 0.0
    %1163 = vmatpush.xpose.msra.mxu0 0.0
    %1164 = vmatpush.xpose.msra.mxu0 0.0
    %1165 = vmatpush.xpose.msra.mxu0 0.0
    %1166 = vmatpush.xpose.msra.mxu0 0.0
    %1167 = vmatpush.xpose.msra.mxu0 0.0
    %1168 = vmatpush.xpose.msra.mxu0 0.0
    %1169 = vmatpush.xpose.msra.mxu0 %v1153
    %1170 = vmatpush.xpose.msra.mxu0 %v1151
    %1171 = vmatmul.f32.gmra.mxu0 %v1147
    %v1172 = vpop.f32.mrf.mxu0
    %v1173 = vadd.f32 0.0, %v1172
    %1174 = vmatmul.f32.gmra.mxu0 %v1149
    %v1175 = vpop.f32.mrf.mxu0
    %v1176 = vadd.f32 0.0, %v1175
    %1177 = vdwg.mxu0
    %v1178 = vmul.f32 %v1173, 0.35355338
    %v1179 = vmul.f32 %v1176, 0.35355338
    %v1180 = vadd.f32 %v1178, %v174
    %v1181 = vadd.f32 %v1179, %v176
    %v1182 = vsel %vm181, %v1180, -inf
    %1183 = vmax.xlane.f32.xlu0 %v1182
    %v1184 = vpop.xlane.xlu0 %1183
    %v1185 = vsel %vm181, %v1181, -inf
    %1186 = vmax.xlane.f32.xlu0 %v1185
    %v1187 = vpop.xlane.xlu0 %1186
    %v1188 = vsub.f32 %v1180, %v1184
    %v1189 = vsub.f32 %v1181, %v1187
    %v1190 = vmul.f32 %v1188, 1.442695
    %v1191 = vpow.pop %v1190
    %v1192 = vmul.f32 %v1189, 1.442695
    %v1193 = vpow.pop %v1192
    %v1194 = vsel %vm181, %v1191, 0.0
    %1195 = vadd.xlane.f32.xlu0 %v1194
    %v1196 = vpop.xlane.xlu0 %1195
    %v1197 = vsel %vm181, %v1193, 0.0
    %1198 = vadd.xlane.f32.xlu0 %v1197
    %v1199 = vpop.xlane.xlu0 %1198
    %v1200 = vrcp.pop %v1196
    %v1201 = vrcp.pop %v1199
    %v1202 = vmul.f32 %v1191, %v1200
    %v1203 = vmul.f32 %v1193, %v1201
    %1204 = vrot.lane.b32.xlu0 %v836, 40
    %v1205 = vpop.permute.xlu0 %1204
    %1206 = vrot.lane.b32.xlu0 %v839, 40
    %v1207 = vpop.permute.xlu0 %1206
    %v1211 = vsel %vm181, %v1202, 0
    %v1214 = vsel %vm181, %v1203, 0
    %1216 = vmatpush.msra.mxu0 0.0
    %1217 = vmatpush.msra.mxu0 0.0
    %1218 = vmatpush.msra.mxu0 0.0
    %1219 = vmatpush.msra.mxu0 0.0
    %1220 = vmatpush.msra.mxu0 0.0
    %1221 = vmatpush.msra.mxu0 0.0
    %1222 = vmatpush.msra.mxu0 0.0
    %1223 = vmatpush.msra.mxu0 0.0
    %1224 = vmatpush.msra.mxu0 0.0
    %1225 = vmatpush.msra.mxu0 0.0
    %1226 = vmatpush.msra.mxu0 0.0
    %1227 = vmatpush.msra.mxu0 0.0
    %1228 = vmatpush.msra.mxu0 0.0
    %1229 = vmatpush.msra.mxu0 0.0
    %1230 = vmatpush.msra.mxu0 %v1207
    %1231 = vmatpush.msra.mxu0 %v1205
    %1232 = vmatmul.f32.gmra.mxu0 %v1211
    %v1233 = vpop.f32.mrf.mxu0
    %v1234 = vadd.f32 0.0, %v1233
    %1235 = vmatmul.f32.gmra.mxu0 %v1214
    %v1236 = vpop.f32.mrf.mxu0
    %v1237 = vadd.f32 0.0, %v1236
    %1238 = vdwg.mxu0
    %1241 = vrot.lane.b32.xlu0 %v1034, 8
    %v1242 = vpop.permute.xlu0 %1241
    %1243 = vrot.lane.b32.xlu0 %v1037, 8
    %v1244 = vpop.permute.xlu0 %1243
    %1249 = vrot.lane.b32.xlu0 %v1134, 16
    %v1250 = vpop.permute.xlu0 %1249
    %1251 = vrot.lane.b32.xlu0 %v1137, 16
    %v1252 = vpop.permute.xlu0 %1251
    %1257 = vrot.lane.b32.xlu0 %v1234, 24
    %v1258 = vpop.permute.xlu0 %1257
    %1259 = vrot.lane.b32.xlu0 %v1237, 24
    %v1260 = vpop.permute.xlu0 %1259
    %v1263 = vsel %vm137, %v934, %v1242
    %v1264 = vsel %vm137, %v937, %v1244
    %v1265 = vsel %vm181, %v1263, %v1250
    %v1266 = vsel %vm181, %v1264, %v1252
    %v1267 = vsel %vm567, %v1265, %v1258
    %v1268 = vsel %vm567, %v1266, %v1260
    %s1269 = scalar_lea.vmem %s5, 32
    %v1270 = vld [vmem:[%s1269] sm:$0xff]
    %v1271 = vld [vmem:[%s1269 + $0x8] sm:$0xff]
    %v1272 = vld [vmem:[%s1269 + $0x10] sm:$0xff]
    %v1273 = vld [vmem:[%s1269 + $0x18] sm:$0xff]
    %v1274 = vperm.slane %v799, 0
    %v1276 = vsel %vm101, %v1267, 0
    %v1279 = vsel %vm101, %v1268, 0
    %1281 = vmatpush.msra.mxu0 0.0
    %1282 = vmatpush.msra.mxu0 0.0
    %1283 = vmatpush.msra.mxu0 0.0
    %1284 = vmatpush.msra.mxu0 0.0
    %1285 = vmatpush.msra.mxu0 0.0
    %1286 = vmatpush.msra.mxu0 0.0
    %1287 = vmatpush.msra.mxu0 0.0
    %1288 = vmatpush.msra.mxu0 0.0
    %1289 = vmatpush.msra.mxu0 0.0
    %1290 = vmatpush.msra.mxu0 0.0
    %1291 = vmatpush.msra.mxu0 0.0
    %1292 = vmatpush.msra.mxu0 0.0
    %1293 = vmatpush.msra.mxu0 %v1273
    %1294 = vmatpush.msra.mxu0 %v1272
    %1295 = vmatpush.msra.mxu0 %v1271
    %1296 = vmatpush.msra.mxu0 %v1270
    %1297 = vmatmul.f32.gmra.mxu0 %v1276
    %v1298 = vpop.f32.mrf.mxu0
    %v1299 = vadd.f32 %v1274, %v1298
    %1300 = vmatmul.f32.gmra.mxu0 %v1279
    %v1301 = vpop.f32.mrf.mxu0
    %v1302 = vadd.f32 %v1274, %v1301
    %1303 = vdwg.mxu0
    %v1304 = vadd.f32 %v796, %v1299
    %v1305 = vadd.f32 %v797, %v1302
    %v1306 = vsel %vm101, %v1304, 0.0
    %1307 = vadd.xlane.f32.xlu0 %v1306
    %v1308 = vpop.xlane.xlu0 %1307
    %v1309 = vsel %vm101, %v1305, 0.0
    %1310 = vadd.xlane.f32.xlu0 %v1309
    %v1311 = vpop.xlane.xlu0 %1310
    %v1312 = vmul.f32 %v1308, %v618
    %v1313 = vmul.f32 %v1311, %v618
    %v1314 = vmul.f32 %v1304, %v1304
    %v1315 = vmul.f32 %v1305, %v1305
    %v1316 = vsel %vm101, %v1314, 0.0
    %1317 = vadd.xlane.f32.xlu0 %v1316
    %v1318 = vpop.xlane.xlu0 %1317
    %v1319 = vsel %vm101, %v1315, 0.0
    %1320 = vadd.xlane.f32.xlu0 %v1319
    %v1321 = vpop.xlane.xlu0 %1320
    %v1322 = vmul.f32 %v1318, %v618
    %v1323 = vmul.f32 %v1321, %v618
    %v1324 = vmul.f32 %v1312, %v1312
    %v1325 = vmul.f32 %v1313, %v1313
    %v1326 = vsub.f32 %v1322, %v1324
    %v1327 = vsub.f32 %v1323, %v1325
    %v1328 = vsub.f32 %v1304, %v1312
    %v1329 = vsub.f32 %v1305, %v1313
    %v1330 = vadd.f32 %v1326, 1e-05
    %v1331 = vadd.f32 %v1327, 1e-05
    %v1332 = vrsqrt.pop %v1330
    %v1333 = vmul.f32 %v1332, %v1330
    %v1334 = vmul.f32 %v1333, %v1332
    %v1335 = vmul.f32 0.5, %v1334
    %v1336 = vsub.f32 1.5, %v1335
    %v1337 = vmul.f32 %v1332, %v1336
    %vm1338 = vweird.f32 %v1330
    %vm1339 = vweird.f32 %v1332
    %vm1340 = vmor %vm1338, %vm1339
    %v1341 = vsel %vm1340, %v1332, %v1337
    %v1342 = vrsqrt.pop %v1331
    %v1343 = vmul.f32 %v1342, %v1331
    %v1344 = vmul.f32 %v1343, %v1342
    %v1345 = vmul.f32 0.5, %v1344
    %v1346 = vsub.f32 1.5, %v1345
    %v1347 = vmul.f32 %v1342, %v1346
    %vm1348 = vweird.f32 %v1331
    %vm1349 = vweird.f32 %v1342
    %vm1350 = vmor %vm1348, %vm1349
    %v1351 = vsel %vm1350, %v1342, %v1347
    %v1352 = vmul.f32 %v1328, %v1341
    %v1353 = vmul.f32 %v1329, %v1351
    %v1354 = vperm.slane %v800, 0
    %v1355 = vmul.f32 %v1352, %v1354
    %v1356 = vmul.f32 %v1353, %v1354
    %v1357 = vperm.slane %v801, 0
    %v1358 = vadd.f32 %v1355, %v1357
    %v1359 = vadd.f32 %v1356, %v1357
    %s1360 = scalar_lea.vmem %s6, 32
    %v1361 = vld [vmem:[%s1360] sm:$0xff]
    %v1362 = vld [vmem:[%s1360 + $0x8] sm:$0xff]
    %v1363 = vld [vmem:[%s1360 + $0x10] sm:$0xff]
    %v1364 = vld [vmem:[%s1360 + $0x18] sm:$0xff]
    %v1365 = vperm.slane %v802, 0
    %v1367 = vsel %vm101, %v1358, 0
    %v1370 = vsel %vm101, %v1359, 0
    %1372 = vmatpush.msra.mxu0 0.0
    %1373 = vmatpush.msra.mxu0 0.0
    %1374 = vmatpush.msra.mxu0 0.0
    %1375 = vmatpush.msra.mxu0 0.0
    %1376 = vmatpush.msra.mxu0 0.0
    %1377 = vmatpush.msra.mxu0 0.0
    %1378 = vmatpush.msra.mxu0 0.0
    %1379 = vmatpush.msra.mxu0 0.0
    %1380 = vmatpush.msra.mxu0 0.0
    %1381 = vmatpush.msra.mxu0 0.0
    %1382 = vmatpush.msra.mxu0 0.0
    %1383 = vmatpush.msra.mxu0 0.0
    %1384 = vmatpush.msra.mxu0 %v1364
    %1385 = vmatpush.msra.mxu0 %v1363
    %1386 = vmatpush.msra.mxu0 %v1362
    %1387 = vmatpush.msra.mxu0 %v1361
    %1388 = vmatmul.f32.gmra.mxu0 %v1367
    %v1389 = vpop.f32.mrf.mxu0
    %v1390 = vadd.f32 %v1365, %v1389
    %1391 = vmatmul.f32.gmra.mxu0 %v1370
    %v1392 = vpop.f32.mrf.mxu0
    %v1393 = vadd.f32 %v1365, %v1392
    %1394 = vdwg.mxu0
    %v1395 = vmax.f32 %v1390, 0.0
    %v1396 = vmax.f32 %v1393, 0.0
    %s1397 = scalar_lea.vmem %s7, 64
    %v1398 = vld [vmem:[%s1397] sm:$0xff]
    %v1399 = vld [vmem:[%s1397 + $0x8] sm:$0xff]
    %v1400 = vld [vmem:[%s1397 + $0x10] sm:$0xff]
    %v1401 = vld [vmem:[%s1397 + $0x18] sm:$0xff]
    %v1402 = vld [vmem:[%s1397 + $0x20] sm:$0xff]
    %v1403 = vld [vmem:[%s1397 + $0x28] sm:$0xff]
    %v1404 = vld [vmem:[%s1397 + $0x30] sm:$0xff]
    %v1405 = vld [vmem:[%s1397 + $0x38] sm:$0xff]
    %v1406 = vperm.slane %v803, 0
    %v1408 = vsel %vm712, %v1395, 0
    %v1411 = vsel %vm712, %v1396, 0
    %1413 = vmatpush.msra.mxu0 0.0
    %1414 = vmatpush.msra.mxu0 0.0
    %1415 = vmatpush.msra.mxu0 0.0
    %1416 = vmatpush.msra.mxu0 0.0
    %1417 = vmatpush.msra.mxu0 0.0
    %1418 = vmatpush.msra.mxu0 0.0
    %1419 = vmatpush.msra.mxu0 0.0
    %1420 = vmatpush.msra.mxu0 0.0
    %1421 = vmatpush.msra.mxu0 %v1405
    %1422 = vmatpush.msra.mxu0 %v1404
    %1423 = vmatpush.msra.mxu0 %v1403
    %1424 = vmatpush.msra.mxu0 %v1402
    %1425 = vmatpush.msra.mxu0 %v1401
    %1426 = vmatpush.msra.mxu0 %v1400
    %1427 = vmatpush.msra.mxu0 %v1399
    %1428 = vmatpush.msra.mxu0 %v1398
    %1429 = vmatmul.f32.gmra.mxu0 %v1408
    %v1430 = vpop.f32.mrf.mxu0
    %v1431 = vadd.f32 %v1406, %v1430
    %1432 = vmatmul.f32.gmra.mxu0 %v1411
    %v1433 = vpop.f32.mrf.mxu0
    %v1434 = vadd.f32 %v1406, %v1433
    %1435 = vdwg.mxu0
    %v1436 = vadd.f32 %v1358, %v1431
    %v1437 = vadd.f32 %v1359, %v1434
    %v1438 = vsel %vm101, %v1436, 0.0
    %1439 = vadd.xlane.f32.xlu0 %v1438
    %v1440 = vpop.xlane.xlu0 %1439
    %v1441 = vsel %vm101, %v1437, 0.0
    %1442 = vadd.xlane.f32.xlu0 %v1441
    %v1443 = vpop.xlane.xlu0 %1442
    %v1444 = vmul.f32 %v1440, %v618
    %v1445 = vmul.f32 %v1443, %v618
    %v1446 = vmul.f32 %v1436, %v1436
    %v1447 = vmul.f32 %v1437, %v1437
    %v1448 = vsel %vm101, %v1446, 0.0
    %1449 = vadd.xlane.f32.xlu0 %v1448
    %v1450 = vpop.xlane.xlu0 %1449
    %v1451 = vsel %vm101, %v1447, 0.0
    %1452 = vadd.xlane.f32.xlu0 %v1451
    %v1453 = vpop.xlane.xlu0 %1452
    %v1454 = vmul.f32 %v1450, %v618
    %v1455 = vmul.f32 %v1453, %v618
    %v1456 = vmul.f32 %v1444, %v1444
    %v1457 = vmul.f32 %v1445, %v1445
    %v1458 = vsub.f32 %v1454, %v1456
    %v1459 = vsub.f32 %v1455, %v1457
    %v1460 = vsub.f32 %v1436, %v1444
    %v1461 = vsub.f32 %v1437, %v1445
    %v1462 = vadd.f32 %v1458, 1e-05
    %v1463 = vadd.f32 %v1459, 1e-05
    %v1464 = vrsqrt.pop %v1462
    %v1465 = vmul.f32 %v1464, %v1462
    %v1466 = vmul.f32 %v1465, %v1464
    %v1467 = vmul.f32 0.5, %v1466
    %v1468 = vsub.f32 1.5, %v1467
    %v1469 = vmul.f32 %v1464, %v1468
    %vm1470 = vweird.f32 %v1462
    %vm1471 = vweird.f32 %v1464
    %vm1472 = vmor %vm1470, %vm1471
    %v1473 = vsel %vm1472, %v1464, %v1469
    %v1474 = vrsqrt.pop %v1463
    %v1475 = vmul.f32 %v1474, %v1463
    %v1476 = vmul.f32 %v1475, %v1474
    %v1477 = vmul.f32 0.5, %v1476
    %v1478 = vsub.f32 1.5, %v1477
    %v1479 = vmul.f32 %v1474, %v1478
    %vm1480 = vweird.f32 %v1463
    %vm1481 = vweird.f32 %v1474
    %vm1482 = vmor %vm1480, %vm1481
    %v1483 = vsel %vm1482, %v1474, %v1479
    %v1484 = vmul.f32 %v1460, %v1473
    %v1485 = vmul.f32 %v1461, %v1483
    %v1486 = vperm.slane %v804, 0
    %v1487 = vmul.f32 %v1484, %v1486
    %v1488 = vmul.f32 %v1485, %v1486
    %v1489 = vperm.slane %v805, 0
    %v1490 = vadd.f32 %v1487, %v1489
    %v1491 = vadd.f32 %v1488, %v1489
    %v1492 = vld [vmem:[%s2 + $0x10] sm:$0x1]
    %v1493 = vld [vmem:[%s2 + $0x11] sm:$0x1]
    %v1494 = vsel %vm101, %v1490, 0.0
    %1495 = vadd.xlane.f32.xlu0 %v1494
    %v1496 = vpop.xlane.xlu0 %1495
    %v1497 = vsel %vm101, %v1491, 0.0
    %1498 = vadd.xlane.f32.xlu0 %v1497
    %v1499 = vpop.xlane.xlu0 %1498
    %v1500 = vmul.f32 %v1496, %v618
    %v1501 = vmul.f32 %v1499, %v618
    %v1502 = vmul.f32 %v1490, %v1490
    %v1503 = vmul.f32 %v1491, %v1491
    %v1504 = vsel %vm101, %v1502, 0.0
    %1505 = vadd.xlane.f32.xlu0 %v1504
    %v1506 = vpop.xlane.xlu0 %1505
    %v1507 = vsel %vm101, %v1503, 0.0
    %1508 = vadd.xlane.f32.xlu0 %v1507
    %v1509 = vpop.xlane.xlu0 %1508
    %v1510 = vmul.f32 %v1506, %v618
    %v1511 = vmul.f32 %v1509, %v618
    %v1512 = vmul.f32 %v1500, %v1500
    %v1513 = vmul.f32 %v1501, %v1501
    %v1514 = vsub.f32 %v1510, %v1512
    %v1515 = vsub.f32 %v1511, %v1513
    %v1516 = vsub.f32 %v1490, %v1500
    %v1517 = vsub.f32 %v1491, %v1501
    %v1518 = vadd.f32 %v1514, 1e-05
    %v1519 = vadd.f32 %v1515, 1e-05
    %v1520 = vrsqrt.pop %v1518
    %v1521 = vmul.f32 %v1520, %v1518
    %v1522 = vmul.f32 %v1521, %v1520
    %v1523 = vmul.f32 0.5, %v1522
    %v1524 = vsub.f32 1.5, %v1523
    %v1525 = vmul.f32 %v1520, %v1524
    %vm1526 = vweird.f32 %v1518
    %vm1527 = vweird.f32 %v1520
    %vm1528 = vmor %vm1526, %vm1527
    %v1529 = vsel %vm1528, %v1520, %v1525
    %v1530 = vrsqrt.pop %v1519
    %v1531 = vmul.f32 %v1530, %v1519
    %v1532 = vmul.f32 %v1531, %v1530
    %v1533 = vmul.f32 0.5, %v1532
    %v1534 = vsub.f32 1.5, %v1533
    %v1535 = vmul.f32 %v1530, %v1534
    %vm1536 = vweird.f32 %v1519
    %vm1537 = vweird.f32 %v1530
    %vm1538 = vmor %vm1536, %vm1537
    %v1539 = vsel %vm1538, %v1530, %v1535
    %v1540 = vmul.f32 %v1516, %v1529
    %v1541 = vmul.f32 %v1517, %v1539
    %v1542 = vperm.slane %v1492, 0
    %v1543 = vmul.f32 %v1540, %v1542
    %v1544 = vmul.f32 %v1541, %v1542
    %v1545 = vperm.slane %v1493, 0
    %v1546 = vadd.f32 %v1543, %v1545
    %v1547 = vadd.f32 %v1544, %v1545
    %v1548 = vlaneseq
    %v1549 = vshrl.u32 %v1548, 7
    %v1550 = vmul.u32 %v1549, 8
    %vm1551 = vcmp.ge.s32.totalorder %v36, %v1550
    %v1552 = vadd.s32 %v1550, 8
    %vm1553 = vcmp.lt.s32.totalorder %v36, %v1552
    %vm1554 = vmand %vm1551, %vm1553
    %v1555 = vsel %vm1554, 0.125, 0.0
    %v1557 = vsel %vm181, %v1555, 0
    %1559 = vmatpush.msra.mxu0 0.0
    %1560 = vmatpush.msra.mxu0 0.0
    %1561 = vmatpush.msra.mxu0 0.0
    %1562 = vmatpush.msra.mxu0 0.0
    %1563 = vmatpush.msra.mxu0 0.0
    %1564 = vmatpush.msra.mxu0 0.0
    %1565 = vmatpush.msra.mxu0 0.0
    %1566 = vmatpush.msra.mxu0 0.0
    %1567 = vmatpush.msra.mxu0 0.0
    %1568 = vmatpush.msra.mxu0 0.0
    %1569 = vmatpush.msra.mxu0 0.0
    %1570 = vmatpush.msra.mxu0 0.0
    %1571 = vmatpush.msra.mxu0 0.0
    %1572 = vmatpush.msra.mxu0 0.0
    %1573 = vmatpush.msra.mxu0 %v1547
    %1574 = vmatpush.msra.mxu0 %v1546
    %1575 = vmatmul.f32.gmra.mxu0 %v1557
    %v1576 = vpop.f32.mrf.mxu0
    %v1577 = vadd.f32 0.0, %v1576
    %1578 = vdwg.mxu0
    %v1579 = vld [vmem:[%s8] sm:$0xff]
    %v1580 = vld [vmem:[%s8 + $0x8] sm:$0xff]
    %v1581 = vld [vmem:[%s8 + $0x10] sm:$0xff]
    %v1582 = vld [vmem:[%s8 + $0x18] sm:$0xff]
    %v1583 = vld [vmem:[%s2 + $0x12] sm:$0x1]
    %v1584 = vperm.slane %v1583, 0
    %v1586 = vsel %vm101, %v1577, 0
    %1588 = vmatpush.msra.mxu0 0.0
    %1589 = vmatpush.msra.mxu0 0.0
    %1590 = vmatpush.msra.mxu0 0.0
    %1591 = vmatpush.msra.mxu0 0.0
    %1592 = vmatpush.msra.mxu0 0.0
    %1593 = vmatpush.msra.mxu0 0.0
    %1594 = vmatpush.msra.mxu0 0.0
    %1595 = vmatpush.msra.mxu0 0.0
    %1596 = vmatpush.msra.mxu0 0.0
    %1597 = vmatpush.msra.mxu0 0.0
    %1598 = vmatpush.msra.mxu0 0.0
    %1599 = vmatpush.msra.mxu0 0.0
    %1600 = vmatpush.msra.mxu0 %v1582
    %1601 = vmatpush.msra.mxu0 %v1581
    %1602 = vmatpush.msra.mxu0 %v1580
    %1603 = vmatpush.msra.mxu0 %v1579
    %1604 = vmatmul.f32.gmra.mxu0 %v1586
    %v1605 = vpop.f32.mrf.mxu0
    %v1606 = vadd.f32 %v1584, %v1605
    %1607 = vdwg.mxu0
    %vm1608 = vcmask 123904
    %1609 = vst.msk [vmem:[#allocation2] sm:$0x3] %vm1608, %v1606
    // Predicated region
    $region38: #{encoder_network_forward.1} parent=1 // pred_check
      _
    $region39: #{encoder_network_forward.1} parent=1 // pred_check_branch
      %1611 = sbr.rel (0) target = $region41
    $region40: #{encoder_network_forward.1} parent=1 // pred_region
      %1613 = vsyncadd [#allocation3], 0
      %s1615 = sshll.u32 [#allocation2], 4
      %s1616 = int_to_ptr.vmem [resolvable:$true] %s1615
      %s1617 = sshll.u32 %s9, 4
      %s1618 = int_to_ptr.hbm [resolvable:$true] %s1617
      %1620 = dma.vmem_to_hbm [thread:$0]  %s1616, 32, %s1618, [#allocation3]
    $region41: #{encoder_network_forward.1} parent=1 // pred_fallthru
      _
    // Predicated region
    $region42: #{encoder_network_forward.1} parent=1 // pred_check
      _
    $region43: #{encoder_network_forward.1} parent=1 // pred_check_branch
      %1622 = sbr.rel (0) target = $region45
    $region44: #{encoder_network_forward.1} parent=1 // pred_region
      %1624 = dma.done [#allocation3], 32
    $region45: #{encoder_network_forward.1} parent=1 // pred_fallthru
      _
    %1625 = vsyncpa [#allocation3], 1

</llo_original>
